<compile_context>
chip_gen: v6e
topology: v6e:2x2x1
jax: 0.10.0
libtpu: 0.0.40
codegen_flags: <defaults>
</compile_context>

<pallas_src>
import math

import jax
import jax.numpy as jnp
from jax import lax
from jax.experimental import pallas as pl
from jax.experimental.pallas import tpu as pltpu

LANE = 128


def _round_up(x, m):
    return ((x + m - 1) // m) * m


# ----------------------------- in-kernel math helpers -----------------------------

def _sigmoid(x):
    # single EUP pass (tanh) instead of exp + reciprocal; mathematically exact.
    return 0.5 * jnp.tanh(0.5 * x) + 0.5


def _softplus(x):
    # numerically stable softplus (matches F.softplus up to its threshold shortcut)
    # TODO(synk): bit-exact parity with torch would need log1p + the threshold=20 path.
    return jnp.maximum(x, 0.0) + jnp.log(1.0 + jnp.exp(-jnp.abs(x)))


def _softmax(x, axis):
    m = jnp.max(x, axis=axis, keepdims=True)
    e = jnp.exp(x - m)
    return e / jnp.sum(e, axis=axis, keepdims=True)      # exact division (recurrent state)


# ----------------------------- the sequence kernel -----------------------------

def make_ntm_seq_kernel(T, I, O, H, L, nh, N, M, BT, HP, OP):
    """Kernel runs the whole T-step sequence for one batch tile of BT rows."""

    def _address(k, beta, g, s, gamma, w_prev, mem):
        # mem: (BT, M, N) with N on the lane axis; k: (BT, M)
        mem_e = mem + 1e-16
        k_e = k + 1e-16
        dotkm = jnp.sum(mem_e * k_e[:, :, None], axis=1)              # (BT, N)
        mem_nrm = jnp.sqrt(jnp.sum(mem_e * mem_e, axis=1))            # (BT, N)
        k_nrm = jnp.sqrt(jnp.sum(k_e * k_e, axis=1, keepdims=True))   # (BT, 1)
        cos = dotkm / (jnp.maximum(mem_nrm, 1e-8) * jnp.maximum(k_nrm, 1e-8))
        wc = _softmax(beta * cos, axis=1)
        # interpolation with previous weights
        wg = g * wc + (1.0 - g) * w_prev
        # 3-tap circular convolution via XLU lane rolls
        wg_m1 = pltpu.roll(wg, 1, axis=1)          # wg[(i-1) % N]
        wg_p1 = pltpu.roll(wg, N - 1, axis=1)      # wg[(i+1) % N]
        w_hat = wg_m1 * s[:, 0:1] + wg * s[:, 1:2] + wg_p1 * s[:, 2:3]
        # sharpening; epsilon inside the log guards flush-to-zero w_hat
        w_pow = jnp.exp(gamma * jnp.log(w_hat + 1e-16))
        return w_pow / (jnp.sum(w_pow, axis=1, keepdims=True) + 1e-16)

    def kernel(*refs):
        it = iter(refs)
        # ---- inputs ----
        xg_ref = next(it)                      # (T, BT, 4H)  x@W_ih_x^T + b (precomputed)
        r0_ref = next(it)                      # (nh, BT, M)
        h0_ref = next(it)                      # (L, BT, H)
        c0_ref = next(it)                      # (L, BT, H)
        w0_ref = next(it)                      # (2nh, BT, N)
        m0_ref = next(it)                      # (BT, M, N)
        lstm = []
        for l in range(L):
            if l == 0:
                whh = next(it)                                # (H, 4H)
                wrs = [next(it) for _ in range(nh)]           # (M, 4H) per head
                lstm.append((None, wrs, whh, None))
            else:
                wih = next(it)                                # (H, 4H)
                whh = next(it)                                # (H, 4H)
                b = next(it)                                  # (1, 4H)  (= b_ih + b_hh)
                lstm.append((wih, None, whh, b))
        hfw_ref = next(it)                     # (H, nh*HP + OP)  heads + fc(ctrl) fused
        hfb_ref = next(it)                     # (1, nh*HP + OP)
        fcr_ref = next(it)                     # (nh*M, OP)       fc read-columns
        # ---- outputs (state outputs double as VMEM-resident state carriers) ----
        o_ref = next(it)                       # (T, BT, OP)
        r_ref = next(it)                       # (nh, BT, M)
        h_ref = next(it)                       # (L, BT, H)
        c_ref = next(it)                       # (L, BT, H)
        w_ref = next(it)                       # (2nh, BT, N)
        m_ref = next(it)                       # (BT, M, N)

        # initialize the state carriers once per batch tile
        r_ref[...] = r0_ref[...]
        h_ref[...] = h0_ref[...]
        c_ref[...] = c0_ref[...]
        w_ref[...] = w0_ref[...]
        m_ref[...] = m0_ref[...]

        def _step(t, carry):
            xg_t = xg_ref[t]                   # (BT, 4H), bias already folded in
            mem = m_ref[...]                   # (BT, M, N)

            # ---- controller: stacked LSTM (PyTorch gate order i, f, g, o) ----
            layer_in = None
            for l in range(L):
                h_prev = h_ref[l]
                c_prev = c_ref[l]
                wih, wrs, whh, b = lstm[l]
                if l == 0:
                    gates = xg_t + jnp.dot(h_prev, whh[...],
                                           preferred_element_type=jnp.float32)
                    # TODO(synk): for nh>1 a lane-concat of [h|reads] would fuse these
                    # into one dot; kept as separate small dots to avoid minor-dim
                    # concatenation inside the kernel.
                    for i in range(nh):
                        gates = gates + jnp.dot(r_ref[i], wrs[i][...],
                                                preferred_element_type=jnp.float32)
                else:
                    gates = (b[...]
                             + jnp.dot(layer_in, wih[...],
                                       preferred_element_type=jnp.float32)
                             + jnp.dot(h_prev, whh[...],
                                       preferred_element_type=jnp.float32))
                sig = _sigmoid(gates)                       # one full-128-lane EUP pass
                i_g = sig[:, 0:H]
                f_g = sig[:, H:2 * H]
                o_g = sig[:, 3 * H:4 * H]
                g_g = jnp.tanh(gates[:, 2 * H:3 * H])
                c_new = f_g * c_prev + i_g * g_g
                h_new = o_g * jnp.tanh(c_new)
                h_ref[l] = h_new
                c_ref[l] = c_new
                layer_in = h_new
            ctrl = layer_in                                  # (BT, H)

            # ---- fused head projections + fc(ctrl): one MXU push per step ----
            proj = jnp.dot(ctrl, hfw_ref[...],
                           preferred_element_type=jnp.float32) + hfb_ref[...]
            logits = proj[:, nh * HP:nh * HP + OP]           # fc bias + ctrl part

            # heads in list order [read_i, write_i]
            for i in range(nh):
                blk = proj[:, i * HP:(i + 1) * HP]           # lane-aligned 128 block

                # read head: [k(M), beta(1), g(1), s(3), gamma(1)]
                k = blk[:, 0:M]
                beta = _softplus(blk[:, M:M + 1])
                g = _sigmoid(blk[:, M + 1:M + 2])
                s = _softmax(blk[:, M + 2:M + 5], axis=1)
                gamma = 1.0 + _softplus(blk[:, M + 5:M + 6])
                w_r = _address(k, beta, g, s, gamma, w_ref[2 * i], mem)
                r = jnp.sum(w_r[:, None, :] * mem, axis=2)   # (BT, M)
                r_ref[i] = r
                w_ref[2 * i] = w_r
                logits = logits + jnp.dot(r, fcr_ref[i * M:(i + 1) * M, :],
                                          preferred_element_type=jnp.float32)

                # write head: [k(M), beta(1), g(1), s(3), gamma(1), e(M), a(M)]
                base = M + 6
                k = blk[:, base:base + M]
                beta = _softplus(blk[:, base + M:base + M + 1])
                g = _sigmoid(blk[:, base + M + 1:base + M + 2])
                s = _softmax(blk[:, base + M + 2:base + M + 5], axis=1)
                gamma = 1.0 + _softplus(blk[:, base + M + 5:base + M + 6])
                e = _sigmoid(blk[:, base + M + 6:base + 2 * M + 6])
                a = blk[:, base + 2 * M + 6:base + 3 * M + 6]
                w_w = _address(k, beta, g, s, gamma, w_ref[2 * i + 1], mem)
                erase = w_w[:, None, :] * e[:, :, None]      # lane-dense (BT, M, N)
                add = w_w[:, None, :] * a[:, :, None]
                mem = mem * (1.0 - erase) + add
                w_ref[2 * i + 1] = w_w

            m_ref[...] = mem

            # ---- output: sigmoid(fc(cat([ctrl] + reads))) ----
            o_ref[t] = _sigmoid(logits)        # lanes >= O carry padding, sliced off outside
            return carry

        lax.fori_loop(0, T, _step, 0)

    return kernel


# ----------------------------- wrapper / glue -----------------------------

def ntm_forward_seq(x_seq, state, params, cfg):
    """Run T EncapsulatedNTM.forward() steps in one pallas_call.

    x_seq: (T, B, num_inputs). Returns (o_seq (T, B, num_outputs), final_state)."""
    I, O, H, L, nh, N, M = (cfg[k] for k in
                            ("num_inputs", "num_outputs", "H", "L", "num_heads", "N", "M"))
    T, B = x_seq.shape[0], x_seq.shape[1]
    G4 = 4 * H
    HP = _round_up(4 * M + 12, LANE)     # per-head projection width, lane-padded
    OP = _round_up(max(O, 1), LANE)      # fc output width, lane-padded

    # batch tiling: one grid step per tile; "parallel" axis -> both TCs on v7x
    BT = min(_round_up(B, 8), 64)
    Bp = _round_up(B, BT)
    NB = Bp // BT

    x32 = x_seq.astype(jnp.float32)
    p0 = params["lstm"][0]

    # hoist the input->gates projection (plus both biases) out of the recurrence:
    # one big (T*B, I) x (I, 4H) matmul in XLA instead of T tiny in-kernel matmuls.
    xg = jnp.einsum("tbi,gi->tbg", x32, p0["w_ih"][:, :I]) + (p0["b_ih"] + p0["b_hh"])
    xg_p = jnp.zeros((T, Bp, G4), jnp.float32).at[:, :B].set(xg)

    def pad_b(a, axis):
        pad = [(0, 0)] * a.ndim
        pad[axis] = (0, Bp - B)
        return jnp.pad(a.astype(jnp.float32), pad)

    r0 = pad_b(state["reads"], 1)
    h0 = pad_b(state["h"], 1)
    c0 = pad_b(state["c"], 1)
    w0 = pad_b(state["w"], 1)
    # memory transposed to (B, M, N): N=128 on the lane axis
    m0 = pad_b(jnp.transpose(state["mem"], (0, 2, 1)), 0)

    # ---- repack weights: pre-transpose, fuse, pre-sum biases, lane-pad ----
    weights = []
    for l in range(L):
        p = params["lstm"][l]
        if l == 0:
            weights.append(p["w_hh"].T)                                    # (H, 4H)
            for i in range(nh):
                weights.append(p["w_ih"][:, I + i * M:I + (i + 1) * M].T)  # (M, 4H)
        else:
            weights.append(p["w_ih"].T)
            weights.append(p["w_hh"].T)
            weights.append((p["b_ih"] + p["b_hh"]).reshape(1, G4))

    # fused per-head (read|write) projections + fc(ctrl) columns, 128-lane padded blocks
    hfw = jnp.zeros((H, nh * HP + OP), jnp.float32)
    hfb = jnp.zeros((1, nh * HP + OP), jnp.float32)
    for i in range(nh):
        p = params["heads"][i]
        hw = jnp.concatenate([p["rW"].T, p["wW"].T], axis=1)               # (H, 4M+12)
        hb = jnp.concatenate([p["rb"], p["wb"]]).reshape(1, -1)
        hfw = hfw.at[:, i * HP:i * HP + 4 * M + 12].set(hw)
        hfb = hfb.at[:, i * HP:i * HP + 4 * M + 12].set(hb)
    fcWt = params["fc_W"].T                                                # (H + nh*M, O)
    hfw = hfw.at[:, nh * HP:nh * HP + O].set(fcWt[:H, :])
    hfb = hfb.at[:, nh * HP:nh * HP + O].set(params["fc_b"].reshape(1, O))
    fcr = jnp.zeros((nh * M, OP), jnp.float32).at[:, :O].set(fcWt[H:, :])
    weights += [hfw, hfb, fcr]

    inputs = [xg_p, r0, h0, c0, w0, m0] + [w.astype(jnp.float32) for w in weights]

    def const_spec(a):
        return pl.BlockSpec(a.shape, lambda b, _z=(0,) * a.ndim: _z)   # resident, DMA once

    def batch_spec(shape, axis):
        blk = list(shape)
        blk[axis] = BT

        def imap(b, _axis=axis, _nd=len(shape)):
            z = [0] * _nd
            z[_axis] = b
            return tuple(z)

        return pl.BlockSpec(tuple(blk), imap)

    in_specs = [
        batch_spec((T, Bp, G4), 1),
        batch_spec((nh, Bp, M), 1),
        batch_spec((L, Bp, H), 1),
        batch_spec((L, Bp, H), 1),
        batch_spec((2 * nh, Bp, N), 1),
        batch_spec((Bp, M, N), 0),
    ] + [const_spec(w) for w in weights]

    out_shape = (
        jax.ShapeDtypeStruct((T, Bp, OP), jnp.float32),      # per-step outputs (lane-dense)
        jax.ShapeDtypeStruct((nh, Bp, M), jnp.float32),      # final reads
        jax.ShapeDtypeStruct((L, Bp, H), jnp.float32),       # final h
        jax.ShapeDtypeStruct((L, Bp, H), jnp.float32),       # final c
        jax.ShapeDtypeStruct((2 * nh, Bp, N), jnp.float32),  # final head weights
        jax.ShapeDtypeStruct((Bp, M, N), jnp.float32),       # final memory (transposed)
    )
    out_specs = (
        batch_spec((T, Bp, OP), 1),
        batch_spec((nh, Bp, M), 1),
        batch_spec((L, Bp, H), 1),
        batch_spec((L, Bp, H), 1),
        batch_spec((2 * nh, Bp, N), 1),
        batch_spec((Bp, M, N), 0),
    )

    fn = pl.pallas_call(
        make_ntm_seq_kernel(T, I, O, H, L, nh, N, M, BT, HP, OP),
        grid=(NB,),
        in_specs=in_specs,
        out_specs=out_specs,
        out_shape=out_shape,
        compiler_params=pltpu.CompilerParams(
            dimension_semantics=("parallel",),
            vmem_limit_bytes=32 * 1024 * 1024),
    )
    # TODO(synk): for very long T, stream the (T, ·, 128) x/o slabs with a time grid
    # instead of keeping them fully VMEM-resident (relevant for v7x's 64 MiB VMEM).
    o_seq, r_f, h_f, c_f, w_f, m_f = fn(*inputs)

    o = o_seq[:, :B, :O]
    new_state = dict(reads=r_f[:, :B], h=h_f[:, :B], c=c_f[:, :B],
                     w=w_f[:, :B],
                     mem=jnp.transpose(m_f[:B], (0, 2, 1)))   # back to (B, N, M)
    return o, new_state


def init_params(key, I, O, H, L, nh, N, M):
    """Deterministic synthetic init matching the PyTorch module's shapes/scales."""
    keys = iter(jax.random.split(key, 64))
    nxt = lambda: next(keys)

    def xavier(k, shape, gain):
        fan_out, fan_in = shape
        limit = gain * math.sqrt(6.0 / (fan_in + fan_out))
        return jax.random.uniform(k, shape, minval=-limit, maxval=limit)

    params = {}
    ctrl_in = I + nh * M
    kstd = 1.0 / math.sqrt(H)
    lstm = []
    for l in range(L):
        in_l = ctrl_in if l == 0 else H
        lstm.append(dict(
            w_ih=jax.random.uniform(nxt(), (4 * H, in_l), minval=-kstd, maxval=kstd),
            w_hh=jax.random.uniform(nxt(), (4 * H, H), minval=-kstd, maxval=kstd),
            b_ih=jax.random.uniform(nxt(), (4 * H,), minval=-kstd, maxval=kstd),
            b_hh=jax.random.uniform(nxt(), (4 * H,), minval=-kstd, maxval=kstd)))
    params["lstm"] = lstm
    heads = []
    for _ in range(nh):
        heads.append(dict(
            rW=xavier(nxt(), (M + 6, H), 1.4),
            rb=0.01 * jax.random.normal(nxt(), (M + 6,)),
            wW=xavier(nxt(), (3 * M + 6, H), 1.4),
            wb=0.01 * jax.random.normal(nxt(), (3 * M + 6,))))
    params["heads"] = heads
    params["fc_W"] = xavier(nxt(), (O, H + nh * M), 1.0)
    params["fc_b"] = 0.01 * jax.random.normal(nxt(), (O,))
    stdev = 1.0 / math.sqrt(N + M)
    params["mem_bias"] = jax.random.uniform(nxt(), (1, N, M), minval=-stdev, maxval=stdev)
    params["init_r"] = [0.01 * jax.random.normal(nxt(), (1, M)) for _ in range(nh)]
    params["lstm_h_bias"] = 0.05 * jax.random.normal(nxt(), (L, 1, H))
    params["lstm_c_bias"] = 0.05 * jax.random.normal(nxt(), (L, 1, H))
    return jax.tree_util.tree_map(lambda a: jnp.asarray(a, jnp.float32), params)


def init_state(params, B, L, nh, N, M, H):
    """Equivalent of EncapsulatedNTM.init_sequence(batch_size)."""
    reads = jnp.stack([jnp.tile(r, (B, 1)) for r in params["init_r"]], axis=0)
    h = jnp.tile(params["lstm_h_bias"], (1, B, 1))
    c = jnp.tile(params["lstm_c_bias"], (1, B, 1))
    w = jnp.zeros((2 * nh, B, N), jnp.float32)
    mem = jnp.tile(params["mem_bias"], (B, 1, 1))
    return dict(reads=reads, h=h, c=c, w=w, mem=mem)


if __name__ == "__main__":
    # small config (N=128 matches the pytorch-ntm copy-task default memory size and
    # keeps the address weights / transposed memory lane-dense)
    cfg = dict(num_inputs=8, num_outputs=8, H=32, L=1, num_heads=1, N=128, M=16)
    B, T = 2, 8

    key = jax.random.PRNGKey(0)
    kp, kx = jax.random.split(key)
    params = init_params(kp, cfg["num_inputs"], cfg["num_outputs"], cfg["H"],
                         cfg["L"], cfg["num_heads"], cfg["N"], cfg["M"])
    state = init_state(params, B, cfg["L"], cfg["num_heads"],
                       cfg["N"], cfg["M"], cfg["H"])
    x_seq = jax.random.normal(kx, (T, B, cfg["num_inputs"]), jnp.float32)

    # T forward() steps in a single kernel launch
    o_seq, state = ntm_forward_seq(x_seq, state, params, cfg)
    jax.block_until_ready((o_seq, state))

    assert o_seq.shape == (T, B, cfg["num_outputs"]) and o_seq.dtype == jnp.float32
    assert state["mem"].shape == (B, cfg["N"], cfg["M"])
    assert bool(jnp.all(jnp.isfinite(o_seq)))
    assert bool(jnp.all((o_seq >= 0.0) & (o_seq <= 1.0)))
    assert bool(jnp.all(jnp.isfinite(state["mem"])))
    # TODO(synk): the `x=None -> zeros` default-argument path of forward() is Python-side
    # glue; pass jnp.zeros((T, B, num_inputs)) explicitly if needed.
    print("KERNEL_OK")
</pallas_src>

<mosaic_0001>
module attributes {stable_mosaic.version = 11 : i64} {
  func.func @kernel(%arg0: i32, %arg1: memref<8x8x128xf32, #tpu.memory_space<vmem>>, %arg2: memref<1x8x16xf32, #tpu.memory_space<vmem>>, %arg3: memref<1x8x32xf32, #tpu.memory_space<vmem>>, %arg4: memref<1x8x32xf32, #tpu.memory_space<vmem>>, %arg5: memref<2x8x128xf32, #tpu.memory_space<vmem>>, %arg6: memref<8x16x128xf32, #tpu.memory_space<vmem>>, %arg7: memref<32x128xf32, #tpu.memory_space<vmem>>, %arg8: memref<16x128xf32, #tpu.memory_space<vmem>>, %arg9: memref<32x256xf32, #tpu.memory_space<vmem>>, %arg10: memref<1x256xf32, #tpu.memory_space<vmem>>, %arg11: memref<16x128xf32, #tpu.memory_space<vmem>>, %arg12: memref<8x8x128xf32, #tpu.memory_space<vmem>>, %arg13: memref<1x8x16xf32, #tpu.memory_space<vmem>>, %arg14: memref<1x8x32xf32, #tpu.memory_space<vmem>>, %arg15: memref<1x8x32xf32, #tpu.memory_space<vmem>>, %arg16: memref<2x8x128xf32, #tpu.memory_space<vmem>>, %arg17: memref<8x16x128xf32, #tpu.memory_space<vmem>>) attributes {dimension_semantics = [#tpu.dimension_semantics<parallel>], iteration_bounds = array<i64: 1>, scalar_prefetch = 0 : i64, scratch_operands = 0 : i64, tpu.core_type = #tpu.core_type<tc>, window_params = [{transform_indices = @transform_0, window_bounds = array<i64: 8, 8, 128>}, {transform_indices = @transform_1, window_bounds = array<i64: 1, 8, 16>}, {transform_indices = @transform_2, window_bounds = array<i64: 1, 8, 32>}, {transform_indices = @transform_3, window_bounds = array<i64: 1, 8, 32>}, {transform_indices = @transform_4, window_bounds = array<i64: 2, 8, 128>}, {transform_indices = @transform_5, window_bounds = array<i64: 8, 16, 128>}, {pipeline_mode = #tpu.pipeline_mode<synchronous>, transform_indices = @transform_6, window_bounds = array<i64: 32, 128>}, {pipeline_mode = #tpu.pipeline_mode<synchronous>, transform_indices = @transform_7, window_bounds = array<i64: 16, 128>}, {pipeline_mode = #tpu.pipeline_mode<synchronous>, transform_indices = @transform_8, window_bounds = array<i64: 32, 256>}, {pipeline_mode = #tpu.pipeline_mode<synchronous>, transform_indices = @transform_9, window_bounds = array<i64: 1, 256>}, {pipeline_mode = #tpu.pipeline_mode<synchronous>, transform_indices = @transform_10, window_bounds = array<i64: 16, 128>}, {transform_indices = @transform_11, window_bounds = array<i64: 8, 8, 128>}, {transform_indices = @transform_12, window_bounds = array<i64: 1, 8, 16>}, {transform_indices = @transform_13, window_bounds = array<i64: 1, 8, 32>}, {transform_indices = @transform_14, window_bounds = array<i64: 1, 8, 32>}, {transform_indices = @transform_15, window_bounds = array<i64: 2, 8, 128>}, {transform_indices = @transform_16, window_bounds = array<i64: 8, 16, 128>}]} {
    %c0 = arith.constant 0 : index
    %c0_0 = arith.constant 0 : index
    %c0_1 = arith.constant 0 : index
    %0 = vector.load %arg2[%c0, %c0_0, %c0_1] : memref<1x8x16xf32, #tpu.memory_space<vmem>>, vector<1x8x16xf32>
    %c0_2 = arith.constant 0 : index
    %c0_3 = arith.constant 0 : index
    %c0_4 = arith.constant 0 : index
    %1 = vector.load %arg13[%c0_2, %c0_3, %c0_4] : memref<1x8x16xf32, #tpu.memory_space<vmem>>, vector<1x8x16xf32>
    tpu.vector_store %arg13[%c0_2, %c0_3, %c0_4], %0 {strides = array<i32>} : memref<1x8x16xf32, #tpu.memory_space<vmem>>, vector<1x8x16xf32>,
    %c0_5 = arith.constant 0 : index
    %c0_6 = arith.constant 0 : index
    %c0_7 = arith.constant 0 : index
    %2 = vector.load %arg3[%c0_5, %c0_6, %c0_7] : memref<1x8x32xf32, #tpu.memory_space<vmem>>, vector<1x8x32xf32>
    %c0_8 = arith.constant 0 : index
    %c0_9 = arith.constant 0 : index
    %c0_10 = arith.constant 0 : index
    %3 = vector.load %arg14[%c0_8, %c0_9, %c0_10] : memref<1x8x32xf32, #tpu.memory_space<vmem>>, vector<1x8x32xf32>
    tpu.vector_store %arg14[%c0_8, %c0_9, %c0_10], %2 {strides = array<i32>} : memref<1x8x32xf32, #tpu.memory_space<vmem>>, vector<1x8x32xf32>,
    %c0_11 = arith.constant 0 : index
    %c0_12 = arith.constant 0 : index
    %c0_13 = arith.constant 0 : index
    %4 = vector.load %arg4[%c0_11, %c0_12, %c0_13] : memref<1x8x32xf32, #tpu.memory_space<vmem>>, vector<1x8x32xf32>
    %c0_14 = arith.constant 0 : index
    %c0_15 = arith.constant 0 : index
    %c0_16 = arith.constant 0 : index
    %5 = vector.load %arg15[%c0_14, %c0_15, %c0_16] : memref<1x8x32xf32, #tpu.memory_space<vmem>>, vector<1x8x32xf32>
    tpu.vector_store %arg15[%c0_14, %c0_15, %c0_16], %4 {strides = array<i32>} : memref<1x8x32xf32, #tpu.memory_space<vmem>>, vector<1x8x32xf32>,
    %c0_17 = arith.constant 0 : index
    %c0_18 = arith.constant 0 : index
    %c0_19 = arith.constant 0 : index
    %6 = vector.load %arg5[%c0_17, %c0_18, %c0_19] : memref<2x8x128xf32, #tpu.memory_space<vmem>>, vector<2x8x128xf32>
    %c0_20 = arith.constant 0 : index
    %c0_21 = arith.constant 0 : index
    %c0_22 = arith.constant 0 : index
    %7 = vector.load %arg16[%c0_20, %c0_21, %c0_22] : memref<2x8x128xf32, #tpu.memory_space<vmem>>, vector<2x8x128xf32>
    tpu.vector_store %arg16[%c0_20, %c0_21, %c0_22], %6 {strides = array<i32>} : memref<2x8x128xf32, #tpu.memory_space<vmem>>, vector<2x8x128xf32>,
    %c0_23 = arith.constant 0 : index
    %c0_24 = arith.constant 0 : index
    %c0_25 = arith.constant 0 : index
    %8 = vector.load %arg6[%c0_23, %c0_24, %c0_25] : memref<8x16x128xf32, #tpu.memory_space<vmem>>, vector<8x16x128xf32>
    %c0_26 = arith.constant 0 : index
    %c0_27 = arith.constant 0 : index
    %c0_28 = arith.constant 0 : index
    %9 = vector.load %arg17[%c0_26, %c0_27, %c0_28] : memref<8x16x128xf32, #tpu.memory_space<vmem>>, vector<8x16x128xf32>
    tpu.vector_store %arg17[%c0_26, %c0_27, %c0_28], %8 {strides = array<i32>} : memref<8x16x128xf32, #tpu.memory_space<vmem>>, vector<8x16x128xf32>,
    %c0_i32 = arith.constant 0 : i32
    %c8_i32 = arith.constant 8 : i32
    %10 = arith.addi %c0_i32, %c8_i32 : i32
    %c1_i32 = arith.constant 1 : i32
    scf.for %arg18 = %c0_i32 to %10 step %c1_i32  : i32 {
      %11 = arith.index_cast %arg18 : i32 to index
      %c0_30 = arith.constant 0 : index
      %c0_31 = arith.constant 0 : index
      %12 = vector.load %arg1[%11, %c0_30, %c0_31] : memref<8x8x128xf32, #tpu.memory_space<vmem>>, vector<1x8x128xf32>
      %13 = vector.shape_cast %12 : vector<1x8x128xf32> to vector<8x128xf32>
      %c0_32 = arith.constant 0 : index
      %c0_33 = arith.constant 0 : index
      %c0_34 = arith.constant 0 : index
      %14 = vector.load %arg17[%c0_32, %c0_33, %c0_34] : memref<8x16x128xf32, #tpu.memory_space<vmem>>, vector<8x16x128xf32>
      %c0_35 = arith.constant 0 : index
      %c0_36 = arith.constant 0 : index
      %c0_37 = arith.constant 0 : index
      %15 = vector.load %arg14[%c0_35, %c0_36, %c0_37] : memref<1x8x32xf32, #tpu.memory_space<vmem>>, vector<1x8x32xf32>
      %16 = vector.shape_cast %15 : vector<1x8x32xf32> to vector<8x32xf32>
      %c0_38 = arith.constant 0 : index
      %c0_39 = arith.constant 0 : index
      %c0_40 = arith.constant 0 : index
      %17 = vector.load %arg15[%c0_38, %c0_39, %c0_40] : memref<1x8x32xf32, #tpu.memory_space<vmem>>, vector<1x8x32xf32>
      %18 = vector.shape_cast %17 : vector<1x8x32xf32> to vector<8x32xf32>
      %c0_41 = arith.constant 0 : index
      %c0_42 = arith.constant 0 : index
      %19 = vector.load %arg7[%c0_41, %c0_42] : memref<32x128xf32, #tpu.memory_space<vmem>>, vector<32x128xf32>
      %cst = arith.constant dense<0.000000e+00> : vector<8x128xf32>
      %20 = tpu.matmul %16, %19, %cst {dimension_numbers = #tpu.dot_dimension_numbers<[1], [0], [0], [1], [0, 0, 1, 1], [], []>} : vector<8x32xf32>, vector<32x128xf32>, vector<8x128xf32> -> vector<8x128xf32>
      %21 = arith.addf %13, %20 : vector<8x128xf32>
      %c0_43 = arith.constant 0 : index
      %c0_44 = arith.constant 0 : index
      %c0_45 = arith.constant 0 : index
      %22 = vector.load %arg13[%c0_43, %c0_44, %c0_45] : memref<1x8x16xf32, #tpu.memory_space<vmem>>, vector<1x8x16xf32>
      %23 = vector.shape_cast %22 : vector<1x8x16xf32> to vector<8x16xf32>
      %c0_46 = arith.constant 0 : index
      %c0_47 = arith.constant 0 : index
      %24 = vector.load %arg8[%c0_46, %c0_47] : memref<16x128xf32, #tpu.memory_space<vmem>>, vector<16x128xf32>
      %cst_48 = arith.constant dense<0.000000e+00> : vector<8x128xf32>
      %25 = tpu.matmul %23, %24, %cst_48 {dimension_numbers = #tpu.dot_dimension_numbers<[1], [0], [0], [1], [0, 0, 1, 1], [], []>} : vector<8x16xf32>, vector<16x128xf32>, vector<8x128xf32> -> vector<8x128xf32>
      %26 = arith.addf %21, %25 : vector<8x128xf32>
      %cst_49 = arith.constant 5.000000e-01 : f32
      %27 = vector.broadcast %cst_49 : f32 to vector<8x128xf32>
      %28 = arith.mulf %27, %26 : vector<8x128xf32>
      %29 = math.tanh %28 : vector<8x128xf32>
      %cst_50 = arith.constant 5.000000e-01 : f32
      %30 = vector.broadcast %cst_50 : f32 to vector<8x128xf32>
      %31 = arith.mulf %30, %29 : vector<8x128xf32>
      %cst_51 = arith.constant 5.000000e-01 : f32
      %32 = vector.broadcast %cst_51 : f32 to vector<8x128xf32>
      %33 = arith.addf %31, %32 : vector<8x128xf32>
      %34 = vector.extract_strided_slice %33 {offsets = [0, 0], sizes = [8, 32], strides = [1, 1]} : vector<8x128xf32> to vector<8x32xf32>
      %35 = vector.extract_strided_slice %33 {offsets = [0, 32], sizes = [8, 32], strides = [1, 1]} : vector<8x128xf32> to vector<8x32xf32>
      %36 = vector.extract_strided_slice %33 {offsets = [0, 96], sizes = [8, 32], strides = [1, 1]} : vector<8x128xf32> to vector<8x32xf32>
      %37 = vector.extract_strided_slice %26 {offsets = [0, 64], sizes = [8, 32], strides = [1, 1]} : vector<8x128xf32> to vector<8x32xf32>
      %38 = math.tanh %37 : vector<8x32xf32>
      %39 = arith.mulf %35, %18 : vector<8x32xf32>
      %40 = arith.mulf %34, %38 : vector<8x32xf32>
      %41 = arith.addf %39, %40 : vector<8x32xf32>
      %42 = math.tanh %41 : vector<8x32xf32>
      %43 = arith.mulf %36, %42 : vector<8x32xf32>
      %c0_52 = arith.constant 0 : index
      %c0_53 = arith.constant 0 : index
      %c0_54 = arith.constant 0 : index
      %44 = vector.load %arg14[%c0_52, %c0_53, %c0_54] : memref<1x8x32xf32, #tpu.memory_space<vmem>>, vector<1x8x32xf32>
      %45 = vector.shape_cast %44 : vector<1x8x32xf32> to vector<8x32xf32>
      %46 = vector.shape_cast %43 : vector<8x32xf32> to vector<1x8x32xf32>
      tpu.vector_store %arg14[%c0_52, %c0_53, %c0_54], %46 {strides = array<i32>} : memref<1x8x32xf32, #tpu.memory_space<vmem>>, vector<1x8x32xf32>,
      %c0_55 = arith.constant 0 : index
      %c0_56 = arith.constant 0 : index
      %c0_57 = arith.constant 0 : index
      %47 = vector.load %arg15[%c0_55, %c0_56, %c0_57] : memref<1x8x32xf32, #tpu.memory_space<vmem>>, vector<1x8x32xf32>
      %48 = vector.shape_cast %47 : vector<1x8x32xf32> to vector<8x32xf32>
      %49 = vector.shape_cast %41 : vector<8x32xf32> to vector<1x8x32xf32>
      tpu.vector_store %arg15[%c0_55, %c0_56, %c0_57], %49 {strides = array<i32>} : memref<1x8x32xf32, #tpu.memory_space<vmem>>, vector<1x8x32xf32>,
      %c0_58 = arith.constant 0 : index
      %c0_59 = arith.constant 0 : index
      %50 = vector.load %arg9[%c0_58, %c0_59] : memref<32x256xf32, #tpu.memory_space<vmem>>, vector<32x256xf32>
      %cst_60 = arith.constant dense<0.000000e+00> : vector<8x256xf32>
      %51 = tpu.matmul %43, %50, %cst_60 {dimension_numbers = #tpu.dot_dimension_numbers<[1], [0], [0], [1], [0, 0, 1, 1], [], []>} : vector<8x32xf32>, vector<32x256xf32>, vector<8x256xf32> -> vector<8x256xf32>
      %c0_61 = arith.constant 0 : index
      %c0_62 = arith.constant 0 : index
      %52 = vector.load %arg10[%c0_61, %c0_62] : memref<1x256xf32, #tpu.memory_space<vmem>>, vector<1x256xf32>
      %53 = vector.broadcast %52 : vector<1x256xf32> to vector<8x256xf32>
      %54 = arith.addf %51, %53 : vector<8x256xf32>
      %55 = vector.extract_strided_slice %54 {offsets = [0, 128], sizes = [8, 128], strides = [1, 1]} : vector<8x256xf32> to vector<8x128xf32>
      %56 = vector.extract_strided_slice %54 {offsets = [0, 0], sizes = [8, 128], strides = [1, 1]} : vector<8x256xf32> to vector<8x128xf32>
      %57 = vector.extract_strided_slice %56 {offsets = [0, 0], sizes = [8, 16], strides = [1, 1]} : vector<8x128xf32> to vector<8x16xf32>
      %58 = vector.extract_strided_slice %56 {offsets = [0, 16], sizes = [8, 1], strides = [1, 1]} : vector<8x128xf32> to vector<8x1xf32>
      %cst_63 = arith.constant 0.000000e+00 : f32
      %59 = vector.broadcast %cst_63 : f32 to vector<8x1xf32>
      %60 = arith.maximumf %58, %59 : vector<8x1xf32>
      %61 = math.absf %58 : vector<8x1xf32>
      %cst_64 = arith.constant 0.000000e+00 : f32
      %62 = vector.broadcast %cst_64 : f32 to vector<8x1xf32>
      %63 = arith.subf %62, %61 : vector<8x1xf32>
      %64 = math.exp %63 : vector<8x1xf32>
      %cst_65 = arith.constant 1.000000e+00 : f32
      %65 = vector.broadcast %cst_65 : f32 to vector<8x1xf32>
      %66 = arith.addf %65, %64 : vector<8x1xf32>
      %67 = math.log %66 : vector<8x1xf32>
      %68 = arith.addf %60, %67 : vector<8x1xf32>
      %69 = vector.extract_strided_slice %56 {offsets = [0, 17], sizes = [8, 1], strides = [1, 1]} : vector<8x128xf32> to vector<8x1xf32>
      %cst_66 = arith.constant 5.000000e-01 : f32
      %70 = vector.broadcast %cst_66 : f32 to vector<8x1xf32>
      %71 = arith.mulf %70, %69 : vector<8x1xf32>
      %72 = math.tanh %71 : vector<8x1xf32>
      %cst_67 = arith.constant 5.000000e-01 : f32
      %73 = vector.broadcast %cst_67 : f32 to vector<8x1xf32>
      %74 = arith.mulf %73, %72 : vector<8x1xf32>
      %cst_68 = arith.constant 5.000000e-01 : f32
      %75 = vector.broadcast %cst_68 : f32 to vector<8x1xf32>
      %76 = arith.addf %74, %75 : vector<8x1xf32>
      %77 = vector.extract_strided_slice %56 {offsets = [0, 18], sizes = [8, 3], strides = [1, 1]} : vector<8x128xf32> to vector<8x3xf32>
      %cst_69 = arith.constant dense<0xFF800000> : vector<8xf32>
      %78 = vector.multi_reduction <maximumf>, %77, %cst_69 [1] : vector<8x3xf32> to vector<8xf32>
      %79 = vector.shape_cast %78 : vector<8xf32> to vector<8x1xf32>
      %80 = vector.broadcast %79 : vector<8x1xf32> to vector<8x3xf32>
      %81 = arith.subf %77, %80 : vector<8x3xf32>
      %82 = math.exp %81 : vector<8x3xf32>
      %cst_70 = arith.constant dense<0.000000e+00> : vector<8xf32>
      %83 = vector.multi_reduction <add>, %82, %cst_70 [1] : vector<8x3xf32> to vector<8xf32>
      %84 = vector.shape_cast %83 : vector<8xf32> to vector<8x1xf32>
      %85 = vector.broadcast %84 : vector<8x1xf32> to vector<8x3xf32>
      %86 = arith.divf %82, %85 : vector<8x3xf32>
      %87 = vector.extract_strided_slice %56 {offsets = [0, 21], sizes = [8, 1], strides = [1, 1]} : vector<8x128xf32> to vector<8x1xf32>
      %cst_71 = arith.constant 0.000000e+00 : f32
      %88 = vector.broadcast %cst_71 : f32 to vector<8x1xf32>
      %89 = arith.maximumf %87, %88 : vector<8x1xf32>
      %90 = math.absf %87 : vector<8x1xf32>
      %cst_72 = arith.constant 0.000000e+00 : f32
      %91 = vector.broadcast %cst_72 : f32 to vector<8x1xf32>
      %92 = arith.subf %91, %90 : vector<8x1xf32>
      %93 = math.exp %92 : vector<8x1xf32>
      %cst_73 = arith.constant 1.000000e+00 : f32
      %94 = vector.broadcast %cst_73 : f32 to vector<8x1xf32>
      %95 = arith.addf %94, %93 : vector<8x1xf32>
      %96 = math.log %95 : vector<8x1xf32>
      %97 = arith.addf %89, %96 : vector<8x1xf32>
      %cst_74 = arith.constant 1.000000e+00 : f32
      %98 = vector.broadcast %cst_74 : f32 to vector<8x1xf32>
      %99 = arith.addf %98, %97 : vector<8x1xf32>
      %c0_75 = arith.constant 0 : index
      %c0_76 = arith.constant 0 : index
      %c0_77 = arith.constant 0 : index
      %100 = vector.load %arg16[%c0_75, %c0_76, %c0_77] : memref<2x8x128xf32, #tpu.memory_space<vmem>>, vector<1x8x128xf32>
      %101 = vector.shape_cast %100 : vector<1x8x128xf32> to vector<8x128xf32>
      %cst_78 = arith.constant 1.000000e-16 : f32
      %102 = vector.broadcast %cst_78 : f32 to vector<8x16x128xf32>
      %103 = arith.addf %14, %102 : vector<8x16x128xf32>
      %cst_79 = arith.constant 1.000000e-16 : f32
      %104 = vector.broadcast %cst_79 : f32 to vector<8x16xf32>
      %105 = arith.addf %57, %104 : vector<8x16xf32>
      %106 = vector.shape_cast %105 : vector<8x16xf32> to vector<8x16x1xf32>
      %107 = vector.broadcast %106 : vector<8x16x1xf32> to vector<8x16x128xf32>
      %108 = arith.mulf %103, %107 : vector<8x16x128xf32>
      %cst_80 = arith.constant dense<0.000000e+00> : vector<8x128xf32>
      %109 = vector.multi_reduction <add>, %108, %cst_80 [1] : vector<8x16x128xf32> to vector<8x128xf32>
      %110 = arith.mulf %103, %103 : vector<8x16x128xf32>
      %cst_81 = arith.constant dense<0.000000e+00> : vector<8x128xf32>
      %111 = vector.multi_reduction <add>, %110, %cst_81 [1] : vector<8x16x128xf32> to vector<8x128xf32>
      %112 = math.sqrt %111 : vector<8x128xf32>
      %113 = arith.mulf %105, %105 : vector<8x16xf32>
      %cst_82 = arith.constant dense<0.000000e+00> : vector<8xf32>
      %114 = vector.multi_reduction <add>, %113, %cst_82 [1] : vector<8x16xf32> to vector<8xf32>
      %115 = vector.shape_cast %114 : vector<8xf32> to vector<8x1xf32>
      %116 = math.sqrt %115 : vector<8x1xf32>
      %cst_83 = arith.constant 9.99999993E-9 : f32
      %117 = vector.broadcast %cst_83 : f32 to vector<8x128xf32>
      %118 = arith.maximumf %112, %117 : vector<8x128xf32>
      %cst_84 = arith.constant 9.99999993E-9 : f32
      %119 = vector.broadcast %cst_84 : f32 to vector<8x1xf32>
      %120 = arith.maximumf %116, %119 : vector<8x1xf32>
      %121 = vector.broadcast %120 : vector<8x1xf32> to vector<8x128xf32>
      %122 = arith.mulf %118, %121 : vector<8x128xf32>
      %123 = arith.divf %109, %122 : vector<8x128xf32>
      %124 = vector.broadcast %68 : vector<8x1xf32> to vector<8x128xf32>
      %125 = arith.mulf %124, %123 : vector<8x128xf32>
      %cst_85 = arith.constant dense<0xFF800000> : vector<8xf32>
      %126 = vector.multi_reduction <maximumf>, %125, %cst_85 [1] : vector<8x128xf32> to vector<8xf32>
      %127 = vector.shape_cast %126 : vector<8xf32> to vector<8x1xf32>
      %128 = vector.broadcast %127 : vector<8x1xf32> to vector<8x128xf32>
      %129 = arith.subf %125, %128 : vector<8x128xf32>
      %130 = math.exp %129 : vector<8x128xf32>
      %cst_86 = arith.constant dense<0.000000e+00> : vector<8xf32>
      %131 = vector.multi_reduction <add>, %130, %cst_86 [1] : vector<8x128xf32> to vector<8xf32>
      %132 = vector.shape_cast %131 : vector<8xf32> to vector<8x1xf32>
      %133 = vector.broadcast %132 : vector<8x1xf32> to vector<8x128xf32>
      %134 = arith.divf %130, %133 : vector<8x128xf32>
      %135 = vector.broadcast %76 : vector<8x1xf32> to vector<8x128xf32>
      %136 = arith.mulf %135, %134 : vector<8x128xf32>
      %cst_87 = arith.constant 1.000000e+00 : f32
      %137 = vector.broadcast %cst_87 : f32 to vector<8x1xf32>
      %138 = arith.subf %137, %76 : vector<8x1xf32>
      %139 = vector.broadcast %138 : vector<8x1xf32> to vector<8x128xf32>
      %140 = arith.mulf %139, %101 : vector<8x128xf32>
      %141 = arith.addf %136, %140 : vector<8x128xf32>
      %c1_i32_88 = arith.constant 1 : i32
      %142 = tpu.dynamic_rotate %141 by %c1_i32_88 dim 1 : vector<8x128xf32>, i32 -> vector<8x128xf32>
      %c127_i32 = arith.constant 127 : i32
      %143 = tpu.dynamic_rotate %141 by %c127_i32 dim 1 : vector<8x128xf32>, i32 -> vector<8x128xf32>
      %144 = vector.extract_strided_slice %86 {offsets = [0, 0], sizes = [8, 1], strides = [1, 1]} : vector<8x3xf32> to vector<8x1xf32>
      %145 = vector.broadcast %144 : vector<8x1xf32> to vector<8x128xf32>
      %146 = arith.mulf %142, %145 : vector<8x128xf32>
      %147 = vector.extract_strided_slice %86 {offsets = [0, 1], sizes = [8, 1], strides = [1, 1]} : vector<8x3xf32> to vector<8x1xf32>
      %148 = vector.broadcast %147 : vector<8x1xf32> to vector<8x128xf32>
      %149 = arith.mulf %141, %148 : vector<8x128xf32>
      %150 = arith.addf %146, %149 : vector<8x128xf32>
      %151 = vector.extract_strided_slice %86 {offsets = [0, 2], sizes = [8, 1], strides = [1, 1]} : vector<8x3xf32> to vector<8x1xf32>
      %152 = vector.broadcast %151 : vector<8x1xf32> to vector<8x128xf32>
      %153 = arith.mulf %143, %152 : vector<8x128xf32>
      %154 = arith.addf %150, %153 : vector<8x128xf32>
      %cst_89 = arith.constant 1.000000e-16 : f32
      %155 = vector.broadcast %cst_89 : f32 to vector<8x128xf32>
      %156 = arith.addf %154, %155 : vector<8x128xf32>
      %157 = math.log %156 : vector<8x128xf32>
      %158 = vector.broadcast %99 : vector<8x1xf32> to vector<8x128xf32>
      %159 = arith.mulf %158, %157 : vector<8x128xf32>
      %160 = math.exp %159 : vector<8x128xf32>
      %cst_90 = arith.constant dense<0.000000e+00> : vector<8xf32>
      %161 = vector.multi_reduction <add>, %160, %cst_90 [1] : vector<8x128xf32> to vector<8xf32>
      %162 = vector.shape_cast %161 : vector<8xf32> to vector<8x1xf32>
      %cst_91 = arith.constant 1.000000e-16 : f32
      %163 = vector.broadcast %cst_91 : f32 to vector<8x1xf32>
      %164 = arith.addf %162, %163 : vector<8x1xf32>
      %165 = vector.broadcast %164 : vector<8x1xf32> to vector<8x128xf32>
      %166 = arith.divf %160, %165 : vector<8x128xf32>
      %167 = vector.shape_cast %166 : vector<8x128xf32> to vector<8x1x128xf32>
      %168 = vector.broadcast %167 : vector<8x1x128xf32> to vector<8x16x128xf32>
      %169 = arith.mulf %168, %14 : vector<8x16x128xf32>
      %cst_92 = arith.constant dense<0.000000e+00> : vector<8x16xf32>
      %170 = vector.multi_reduction <add>, %169, %cst_92 [2] : vector<8x16x128xf32> to vector<8x16xf32>
      %c0_93 = arith.constant 0 : index
      %c0_94 = arith.constant 0 : index
      %c0_95 = arith.constant 0 : index
      %171 = vector.load %arg13[%c0_93, %c0_94, %c0_95] : memref<1x8x16xf32, #tpu.memory_space<vmem>>, vector<1x8x16xf32>
      %172 = vector.shape_cast %171 : vector<1x8x16xf32> to vector<8x16xf32>
      %173 = vector.shape_cast %170 : vector<8x16xf32> to vector<1x8x16xf32>
      tpu.vector_store %arg13[%c0_93, %c0_94, %c0_95], %173 {strides = array<i32>} : memref<1x8x16xf32, #tpu.memory_space<vmem>>, vector<1x8x16xf32>,
      %c0_96 = arith.constant 0 : index
      %c0_97 = arith.constant 0 : index
      %c0_98 = arith.constant 0 : index
      %174 = vector.load %arg16[%c0_96, %c0_97, %c0_98] : memref<2x8x128xf32, #tpu.memory_space<vmem>>, vector<1x8x128xf32>
      %175 = vector.shape_cast %174 : vector<1x8x128xf32> to vector<8x128xf32>
      %176 = vector.shape_cast %166 : vector<8x128xf32> to vector<1x8x128xf32>
      tpu.vector_store %arg16[%c0_96, %c0_97, %c0_98], %176 {strides = array<i32>} : memref<2x8x128xf32, #tpu.memory_space<vmem>>, vector<1x8x128xf32>,
      %c0_99 = arith.constant 0 : index
      %c0_100 = arith.constant 0 : index
      %177 = vector.load %arg11[%c0_99, %c0_100] : memref<16x128xf32, #tpu.memory_space<vmem>>, vector<16x128xf32>
      %cst_101 = arith.constant dense<0.000000e+00> : vector<8x128xf32>
      %178 = tpu.matmul %170, %177, %cst_101 {dimension_numbers = #tpu.dot_dimension_numbers<[1], [0], [0], [1], [0, 0, 1, 1], [], []>} : vector<8x16xf32>, vector<16x128xf32>, vector<8x128xf32> -> vector<8x128xf32>
      %179 = arith.addf %55, %178 : vector<8x128xf32>
      %180 = vector.extract_strided_slice %56 {offsets = [0, 22], sizes = [8, 16], strides = [1, 1]} : vector<8x128xf32> to vector<8x16xf32>
      %181 = vector.extract_strided_slice %56 {offsets = [0, 38], sizes = [8, 1], strides = [1, 1]} : vector<8x128xf32> to vector<8x1xf32>
      %cst_102 = arith.constant 0.000000e+00 : f32
      %182 = vector.broadcast %cst_102 : f32 to vector<8x1xf32>
      %183 = arith.maximumf %181, %182 : vector<8x1xf32>
      %184 = math.absf %181 : vector<8x1xf32>
      %cst_103 = arith.constant 0.000000e+00 : f32
      %185 = vector.broadcast %cst_103 : f32 to vector<8x1xf32>
      %186 = arith.subf %185, %184 : vector<8x1xf32>
      %187 = math.exp %186 : vector<8x1xf32>
      %cst_104 = arith.constant 1.000000e+00 : f32
      %188 = vector.broadcast %cst_104 : f32 to vector<8x1xf32>
      %189 = arith.addf %188, %187 : vector<8x1xf32>
      %190 = math.log %189 : vector<8x1xf32>
      %191 = arith.addf %183, %190 : vector<8x1xf32>
      %192 = vector.extract_strided_slice %56 {offsets = [0, 39], sizes = [8, 1], strides = [1, 1]} : vector<8x128xf32> to vector<8x1xf32>
      %cst_105 = arith.constant 5.000000e-01 : f32
      %193 = vector.broadcast %cst_105 : f32 to vector<8x1xf32>
      %194 = arith.mulf %193, %192 : vector<8x1xf32>
      %195 = math.tanh %194 : vector<8x1xf32>
      %cst_106 = arith.constant 5.000000e-01 : f32
      %196 = vector.broadcast %cst_106 : f32 to vector<8x1xf32>
      %197 = arith.mulf %196, %195 : vector<8x1xf32>
      %cst_107 = arith.constant 5.000000e-01 : f32
      %198 = vector.broadcast %cst_107 : f32 to vector<8x1xf32>
      %199 = arith.addf %197, %198 : vector<8x1xf32>
      %200 = vector.extract_strided_slice %56 {offsets = [0, 40], sizes = [8, 3], strides = [1, 1]} : vector<8x128xf32> to vector<8x3xf32>
      %cst_108 = arith.constant dense<0xFF800000> : vector<8xf32>
      %201 = vector.multi_reduction <maximumf>, %200, %cst_108 [1] : vector<8x3xf32> to vector<8xf32>
      %202 = vector.shape_cast %201 : vector<8xf32> to vector<8x1xf32>
      %203 = vector.broadcast %202 : vector<8x1xf32> to vector<8x3xf32>
      %204 = arith.subf %200, %203 : vector<8x3xf32>
      %205 = math.exp %204 : vector<8x3xf32>
      %cst_109 = arith.constant dense<0.000000e+00> : vector<8xf32>
      %206 = vector.multi_reduction <add>, %205, %cst_109 [1] : vector<8x3xf32> to vector<8xf32>
      %207 = vector.shape_cast %206 : vector<8xf32> to vector<8x1xf32>
      %208 = vector.broadcast %207 : vector<8x1xf32> to vector<8x3xf32>
      %209 = arith.divf %205, %208 : vector<8x3xf32>
      %210 = vector.extract_strided_slice %56 {offsets = [0, 43], sizes = [8, 1], strides = [1, 1]} : vector<8x128xf32> to vector<8x1xf32>
      %cst_110 = arith.constant 0.000000e+00 : f32
      %211 = vector.broadcast %cst_110 : f32 to vector<8x1xf32>
      %212 = arith.maximumf %210, %211 : vector<8x1xf32>
      %213 = math.absf %210 : vector<8x1xf32>
      %cst_111 = arith.constant 0.000000e+00 : f32
      %214 = vector.broadcast %cst_111 : f32 to vector<8x1xf32>
      %215 = arith.subf %214, %213 : vector<8x1xf32>
      %216 = math.exp %215 : vector<8x1xf32>
      %cst_112 = arith.constant 1.000000e+00 : f32
      %217 = vector.broadcast %cst_112 : f32 to vector<8x1xf32>
      %218 = arith.addf %217, %216 : vector<8x1xf32>
      %219 = math.log %218 : vector<8x1xf32>
      %220 = arith.addf %212, %219 : vector<8x1xf32>
      %cst_113 = arith.constant 1.000000e+00 : f32
      %221 = vector.broadcast %cst_113 : f32 to vector<8x1xf32>
      %222 = arith.addf %221, %220 : vector<8x1xf32>
      %223 = vector.extract_strided_slice %56 {offsets = [0, 44], sizes = [8, 16], strides = [1, 1]} : vector<8x128xf32> to vector<8x16xf32>
      %cst_114 = arith.constant 5.000000e-01 : f32
      %224 = vector.broadcast %cst_114 : f32 to vector<8x16xf32>
      %225 = arith.mulf %224, %223 : vector<8x16xf32>
      %226 = math.tanh %225 : vector<8x16xf32>
      %cst_115 = arith.constant 5.000000e-01 : f32
      %227 = vector.broadcast %cst_115 : f32 to vector<8x16xf32>
      %228 = arith.mulf %227, %226 : vector<8x16xf32>
      %cst_116 = arith.constant 5.000000e-01 : f32
      %229 = vector.broadcast %cst_116 : f32 to vector<8x16xf32>
      %230 = arith.addf %228, %229 : vector<8x16xf32>
      %231 = vector.extract_strided_slice %56 {offsets = [0, 60], sizes = [8, 16], strides = [1, 1]} : vector<8x128xf32> to vector<8x16xf32>
      %c1 = arith.constant 1 : index
      %c0_117 = arith.constant 0 : index
      %c0_118 = arith.constant 0 : index
      %232 = vector.load %arg16[%c1, %c0_117, %c0_118] : memref<2x8x128xf32, #tpu.memory_space<vmem>>, vector<1x8x128xf32>
      %233 = vector.shape_cast %232 : vector<1x8x128xf32> to vector<8x128xf32>
      %cst_119 = arith.constant 1.000000e-16 : f32
      %234 = vector.broadcast %cst_119 : f32 to vector<8x16x128xf32>
      %235 = arith.addf %14, %234 : vector<8x16x128xf32>
      %cst_120 = arith.constant 1.000000e-16 : f32
      %236 = vector.broadcast %cst_120 : f32 to vector<8x16xf32>
      %237 = arith.addf %180, %236 : vector<8x16xf32>
      %238 = vector.shape_cast %237 : vector<8x16xf32> to vector<8x16x1xf32>
      %239 = vector.broadcast %238 : vector<8x16x1xf32> to vector<8x16x128xf32>
      %240 = arith.mulf %235, %239 : vector<8x16x128xf32>
      %cst_121 = arith.constant dense<0.000000e+00> : vector<8x128xf32>
      %241 = vector.multi_reduction <add>, %240, %cst_121 [1] : vector<8x16x128xf32> to vector<8x128xf32>
      %242 = arith.mulf %235, %235 : vector<8x16x128xf32>
      %cst_122 = arith.constant dense<0.000000e+00> : vector<8x128xf32>
      %243 = vector.multi_reduction <add>, %242, %cst_122 [1] : vector<8x16x128xf32> to vector<8x128xf32>
      %244 = math.sqrt %243 : vector<8x128xf32>
      %245 = arith.mulf %237, %237 : vector<8x16xf32>
      %cst_123 = arith.constant dense<0.000000e+00> : vector<8xf32>
      %246 = vector.multi_reduction <add>, %245, %cst_123 [1] : vector<8x16xf32> to vector<8xf32>
      %247 = vector.shape_cast %246 : vector<8xf32> to vector<8x1xf32>
      %248 = math.sqrt %247 : vector<8x1xf32>
      %cst_124 = arith.constant 9.99999993E-9 : f32
      %249 = vector.broadcast %cst_124 : f32 to vector<8x128xf32>
      %250 = arith.maximumf %244, %249 : vector<8x128xf32>
      %cst_125 = arith.constant 9.99999993E-9 : f32
      %251 = vector.broadcast %cst_125 : f32 to vector<8x1xf32>
      %252 = arith.maximumf %248, %251 : vector<8x1xf32>
      %253 = vector.broadcast %252 : vector<8x1xf32> to vector<8x128xf32>
      %254 = arith.mulf %250, %253 : vector<8x128xf32>
      %255 = arith.divf %241, %254 : vector<8x128xf32>
      %256 = vector.broadcast %191 : vector<8x1xf32> to vector<8x128xf32>
      %257 = arith.mulf %256, %255 : vector<8x128xf32>
      %cst_126 = arith.constant dense<0xFF800000> : vector<8xf32>
      %258 = vector.multi_reduction <maximumf>, %257, %cst_126 [1] : vector<8x128xf32> to vector<8xf32>
      %259 = vector.shape_cast %258 : vector<8xf32> to vector<8x1xf32>
      %260 = vector.broadcast %259 : vector<8x1xf32> to vector<8x128xf32>
      %261 = arith.subf %257, %260 : vector<8x128xf32>
      %262 = math.exp %261 : vector<8x128xf32>
      %cst_127 = arith.constant dense<0.000000e+00> : vector<8xf32>
      %263 = vector.multi_reduction <add>, %262, %cst_127 [1] : vector<8x128xf32> to vector<8xf32>
      %264 = vector.shape_cast %263 : vector<8xf32> to vector<8x1xf32>
      %265 = vector.broadcast %264 : vector<8x1xf32> to vector<8x128xf32>
      %266 = arith.divf %262, %265 : vector<8x128xf32>
      %267 = vector.broadcast %199 : vector<8x1xf32> to vector<8x128xf32>
      %268 = arith.mulf %267, %266 : vector<8x128xf32>
      %cst_128 = arith.constant 1.000000e+00 : f32
      %269 = vector.broadcast %cst_128 : f32 to vector<8x1xf32>
      %270 = arith.subf %269, %199 : vector<8x1xf32>
      %271 = vector.broadcast %270 : vector<8x1xf32> to vector<8x128xf32>
      %272 = arith.mulf %271, %233 : vector<8x128xf32>
      %273 = arith.addf %268, %272 : vector<8x128xf32>
      %c1_i32_129 = arith.constant 1 : i32
      %274 = tpu.dynamic_rotate %273 by %c1_i32_129 dim 1 : vector<8x128xf32>, i32 -> vector<8x128xf32>
      %c127_i32_130 = arith.constant 127 : i32
      %275 = tpu.dynamic_rotate %273 by %c127_i32_130 dim 1 : vector<8x128xf32>, i32 -> vector<8x128xf32>
      %276 = vector.extract_strided_slice %209 {offsets = [0, 0], sizes = [8, 1], strides = [1, 1]} : vector<8x3xf32> to vector<8x1xf32>
      %277 = vector.broadcast %276 : vector<8x1xf32> to vector<8x128xf32>
      %278 = arith.mulf %274, %277 : vector<8x128xf32>
      %279 = vector.extract_strided_slice %209 {offsets = [0, 1], sizes = [8, 1], strides = [1, 1]} : vector<8x3xf32> to vector<8x1xf32>
      %280 = vector.broadcast %279 : vector<8x1xf32> to vector<8x128xf32>
      %281 = arith.mulf %273, %280 : vector<8x128xf32>
      %282 = arith.addf %278, %281 : vector<8x128xf32>
      %283 = vector.extract_strided_slice %209 {offsets = [0, 2], sizes = [8, 1], strides = [1, 1]} : vector<8x3xf32> to vector<8x1xf32>
      %284 = vector.broadcast %283 : vector<8x1xf32> to vector<8x128xf32>
      %285 = arith.mulf %275, %284 : vector<8x128xf32>
      %286 = arith.addf %282, %285 : vector<8x128xf32>
      %cst_131 = arith.constant 1.000000e-16 : f32
      %287 = vector.broadcast %cst_131 : f32 to vector<8x128xf32>
      %288 = arith.addf %286, %287 : vector<8x128xf32>
      %289 = math.log %288 : vector<8x128xf32>
      %290 = vector.broadcast %222 : vector<8x1xf32> to vector<8x128xf32>
      %291 = arith.mulf %290, %289 : vector<8x128xf32>
      %292 = math.exp %291 : vector<8x128xf32>
      %cst_132 = arith.constant dense<0.000000e+00> : vector<8xf32>
      %293 = vector.multi_reduction <add>, %292, %cst_132 [1] : vector<8x128xf32> to vector<8xf32>
      %294 = vector.shape_cast %293 : vector<8xf32> to vector<8x1xf32>
      %cst_133 = arith.constant 1.000000e-16 : f32
      %295 = vector.broadcast %cst_133 : f32 to vector<8x1xf32>
      %296 = arith.addf %294, %295 : vector<8x1xf32>
      %297 = vector.broadcast %296 : vector<8x1xf32> to vector<8x128xf32>
      %298 = arith.divf %292, %297 : vector<8x128xf32>
      %299 = vector.shape_cast %298 : vector<8x128xf32> to vector<8x1x128xf32>
      %300 = vector.shape_cast %230 : vector<8x16xf32> to vector<8x16x1xf32>
      %301 = vector.broadcast %299 : vector<8x1x128xf32> to vector<8x16x128xf32>
      %302 = vector.broadcast %300 : vector<8x16x1xf32> to vector<8x16x128xf32>
      %303 = arith.mulf %301, %302 : vector<8x16x128xf32>
      %304 = vector.shape_cast %298 : vector<8x128xf32> to vector<8x1x128xf32>
      %305 = vector.shape_cast %231 : vector<8x16xf32> to vector<8x16x1xf32>
      %306 = vector.broadcast %304 : vector<8x1x128xf32> to vector<8x16x128xf32>
      %307 = vector.broadcast %305 : vector<8x16x1xf32> to vector<8x16x128xf32>
      %308 = arith.mulf %306, %307 : vector<8x16x128xf32>
      %cst_134 = arith.constant 1.000000e+00 : f32
      %309 = vector.broadcast %cst_134 : f32 to vector<8x16x128xf32>
      %310 = arith.subf %309, %303 : vector<8x16x128xf32>
      %311 = arith.mulf %14, %310 : vector<8x16x128xf32>
      %312 = arith.addf %311, %308 : vector<8x16x128xf32>
      %c1_135 = arith.constant 1 : index
      %c0_136 = arith.constant 0 : index
      %c0_137 = arith.constant 0 : index
      %313 = vector.load %arg16[%c1_135, %c0_136, %c0_137] : memref<2x8x128xf32, #tpu.memory_space<vmem>>, vector<1x8x128xf32>
      %314 = vector.shape_cast %313 : vector<1x8x128xf32> to vector<8x128xf32>
      %315 = vector.shape_cast %298 : vector<8x128xf32> to vector<1x8x128xf32>
      tpu.vector_store %arg16[%c1_135, %c0_136, %c0_137], %315 {strides = array<i32>} : memref<2x8x128xf32, #tpu.memory_space<vmem>>, vector<1x8x128xf32>,
      %c0_138 = arith.constant 0 : index
      %c0_139 = arith.constant 0 : index
      %c0_140 = arith.constant 0 : index
      %316 = vector.load %arg17[%c0_138, %c0_139, %c0_140] : memref<8x16x128xf32, #tpu.memory_space<vmem>>, vector<8x16x128xf32>
      tpu.vector_store %arg17[%c0_138, %c0_139, %c0_140], %312 {strides = array<i32>} : memref<8x16x128xf32, #tpu.memory_space<vmem>>, vector<8x16x128xf32>,
      %cst_141 = arith.constant 5.000000e-01 : f32
      %317 = vector.broadcast %cst_141 : f32 to vector<8x128xf32>
      %318 = arith.mulf %317, %179 : vector<8x128xf32>
      %319 = math.tanh %318 : vector<8x128xf32>
      %cst_142 = arith.constant 5.000000e-01 : f32
      %320 = vector.broadcast %cst_142 : f32 to vector<8x128xf32>
      %321 = arith.mulf %320, %319 : vector<8x128xf32>
      %cst_143 = arith.constant 5.000000e-01 : f32
      %322 = vector.broadcast %cst_143 : f32 to vector<8x128xf32>
      %323 = arith.addf %321, %322 : vector<8x128xf32>
      %324 = arith.index_cast %arg18 : i32 to index
      %c0_144 = arith.constant 0 : index
      %c0_145 = arith.constant 0 : index
      %325 = vector.load %arg12[%324, %c0_144, %c0_145] : memref<8x8x128xf32, #tpu.memory_space<vmem>>, vector<1x8x128xf32>
      %326 = vector.shape_cast %325 : vector<1x8x128xf32> to vector<8x128xf32>
      %327 = vector.shape_cast %323 : vector<8x128xf32> to vector<1x8x128xf32>
      tpu.vector_store %arg12[%324, %c0_144, %c0_145], %327 {strides = array<i32>} : memref<8x8x128xf32, #tpu.memory_space<vmem>>, vector<1x8x128xf32>,
    }
    %c8_i32_29 = arith.constant 8 : i32
    return
  }
  func.func @transform_0(%arg0: i32) -> (i32, i32, i32) {
    %c0_i32 = arith.constant 0 : i32
    %c0_i32_0 = arith.constant 0 : i32
    %c0_i32_1 = arith.constant 0 : i32
    return %c0_i32, %arg0, %c0_i32_0 : i32, i32, i32
  }
  func.func @transform_1(%arg0: i32) -> (i32, i32, i32) {
    %c0_i32 = arith.constant 0 : i32
    %c0_i32_0 = arith.constant 0 : i32
    %c0_i32_1 = arith.constant 0 : i32
    return %c0_i32, %arg0, %c0_i32_0 : i32, i32, i32
  }
  func.func @transform_2(%arg0: i32) -> (i32, i32, i32) {
    %c0_i32 = arith.constant 0 : i32
    %c0_i32_0 = arith.constant 0 : i32
    %c0_i32_1 = arith.constant 0 : i32
    return %c0_i32, %arg0, %c0_i32_0 : i32, i32, i32
  }
  func.func @transform_3(%arg0: i32) -> (i32, i32, i32) {
    %c0_i32 = arith.constant 0 : i32
    %c0_i32_0 = arith.constant 0 : i32
    %c0_i32_1 = arith.constant 0 : i32
    return %c0_i32, %arg0, %c0_i32_0 : i32, i32, i32
  }
  func.func @transform_4(%arg0: i32) -> (i32, i32, i32) {
    %c0_i32 = arith.constant 0 : i32
    %c0_i32_0 = arith.constant 0 : i32
    %c0_i32_1 = arith.constant 0 : i32
    return %c0_i32, %arg0, %c0_i32_0 : i32, i32, i32
  }
  func.func @transform_5(%arg0: i32) -> (i32, i32, i32) {
    %c0_i32 = arith.constant 0 : i32
    %c0_i32_0 = arith.constant 0 : i32
    %c0_i32_1 = arith.constant 0 : i32
    return %arg0, %c0_i32, %c0_i32_0 : i32, i32, i32
  }
  func.func @transform_6(%arg0: i32) -> (i32, i32) {
    %c0_i32 = arith.constant 0 : i32
    %c0_i32_0 = arith.constant 0 : i32
    %c0_i32_1 = arith.constant 0 : i32
    return %c0_i32, %c0_i32_0 : i32, i32
  }
  func.func @transform_7(%arg0: i32) -> (i32, i32) {
    %c0_i32 = arith.constant 0 : i32
    %c0_i32_0 = arith.constant 0 : i32
    %c0_i32_1 = arith.constant 0 : i32
    return %c0_i32, %c0_i32_0 : i32, i32
  }
  func.func @transform_8(%arg0: i32) -> (i32, i32) {
    %c0_i32 = arith.constant 0 : i32
    %c0_i32_0 = arith.constant 0 : i32
    %c0_i32_1 = arith.constant 0 : i32
    return %c0_i32, %c0_i32_0 : i32, i32
  }
  func.func @transform_9(%arg0: i32) -> (i32, i32) {
    %c0_i32 = arith.constant 0 : i32
    %c0_i32_0 = arith.constant 0 : i32
    %c0_i32_1 = arith.constant 0 : i32
    return %c0_i32, %c0_i32_0 : i32, i32
  }
  func.func @transform_10(%arg0: i32) -> (i32, i32) {
    %c0_i32 = arith.constant 0 : i32
    %c0_i32_0 = arith.constant 0 : i32
    %c0_i32_1 = arith.constant 0 : i32
    return %c0_i32, %c0_i32_0 : i32, i32
  }
  func.func @transform_11(%arg0: i32) -> (i32, i32, i32) {
    %c0_i32 = arith.constant 0 : i32
    %c0_i32_0 = arith.constant 0 : i32
    %c0_i32_1 = arith.constant 0 : i32
    return %c0_i32, %arg0, %c0_i32_0 : i32, i32, i32
  }
  func.func @transform_12(%arg0: i32) -> (i32, i32, i32) {
    %c0_i32 = arith.constant 0 : i32
    %c0_i32_0 = arith.constant 0 : i32
    %c0_i32_1 = arith.constant 0 : i32
    return %c0_i32, %arg0, %c0_i32_0 : i32, i32, i32
  }
  func.func @transform_13(%arg0: i32) -> (i32, i32, i32) {
    %c0_i32 = arith.constant 0 : i32
    %c0_i32_0 = arith.constant 0 : i32
    %c0_i32_1 = arith.constant 0 : i32
    return %c0_i32, %arg0, %c0_i32_0 : i32, i32, i32
  }
  func.func @transform_14(%arg0: i32) -> (i32, i32, i32) {
    %c0_i32 = arith.constant 0 : i32
    %c0_i32_0 = arith.constant 0 : i32
    %c0_i32_1 = arith.constant 0 : i32
    return %c0_i32, %arg0, %c0_i32_0 : i32, i32, i32
  }
  func.func @transform_15(%arg0: i32) -> (i32, i32, i32) {
    %c0_i32 = arith.constant 0 : i32
    %c0_i32_0 = arith.constant 0 : i32
    %c0_i32_1 = arith.constant 0 : i32
    return %c0_i32, %arg0, %c0_i32_0 : i32, i32, i32
  }
  func.func @transform_16(%arg0: i32) -> (i32, i32, i32) {
    %c0_i32 = arith.constant 0 : i32
    %c0_i32_0 = arith.constant 0 : i32
    %c0_i32_1 = arith.constant 0 : i32
    return %arg0, %c0_i32, %c0_i32_0 : i32, i32, i32
  }
}

</mosaic_0001>

<llo_original>
// kernel: tpu_custom_call.1
$region0: #{tpu_custom_call.1}
  #allocation0 [shape = 'u32[]', space=smem, size = 0x4, offset = 0x4, fixed_abs, tag = 'smem constant byte address 0x4 - core index']
  #allocation1 [shape = 'u32[144,128]{1,0:T(1,128)}', space=vmem, size = 0x12000, scoped, tag = 'internal scratch']
  %s0 = inlined_call_operand.hbm [shape: f32[8,8,128], index: 0, kind: input, shape index: {}]
  %s1 = inlined_call_operand.hbm [shape: f32[1,8,16], index: 1, kind: input, shape index: {}]
  %s2 = inlined_call_operand.hbm [shape: f32[1,8,32], index: 2, kind: input, shape index: {}]
  %s3 = inlined_call_operand.hbm [shape: f32[1,8,32], index: 3, kind: input, shape index: {}]
  %s4 = inlined_call_operand.hbm [shape: f32[2,8,128], index: 4, kind: input, shape index: {}]
  %s5 = inlined_call_operand.hbm [shape: f32[8,16,128], index: 5, kind: input, shape index: {}]
  %s6 = inlined_call_operand.hbm [shape: f32[32,128], index: 6, kind: input, shape index: {}]
  %s7 = inlined_call_operand.hbm [shape: f32[16,128], index: 7, kind: input, shape index: {}]
  %s8 = inlined_call_operand.hbm [shape: f32[32,256], index: 8, kind: input, shape index: {}]
  %s9 = inlined_call_operand.vmem [shape: f32[1,256], index: 9, kind: input, shape index: {}]
  %s10 = inlined_call_operand.vmem [shape: f32[16,128], index: 10, kind: input, shape index: {}]
  %s11 = inlined_call_operand.hbm [shape: f32[8,8,128], index: 11, kind: output, shape index: {0}]
  %s12 = inlined_call_operand.hbm [shape: f32[1,8,16], index: 12, kind: output, shape index: {1}]
  %s13 = inlined_call_operand.hbm [shape: f32[1,8,32], index: 13, kind: output, shape index: {2}]
  %s14 = inlined_call_operand.hbm [shape: f32[1,8,32], index: 14, kind: output, shape index: {3}]
  %s15 = inlined_call_operand.hbm [shape: f32[2,8,128], index: 15, kind: output, shape index: {4}]
  %s16 = inlined_call_operand.hbm [shape: f32[8,16,128], index: 16, kind: output, shape index: {5}]
  %17 = xla_tuple %s11, %s12, %s13, %s14, %s15, %s16
  %s18 = sld [smem:[#allocation0]]
  $region137: #{tpu_custom_call.1} parent=0
    _
  %s20 = ssub.s32 1, %s18
  %s21 = scalar_select 0, %s20, %s18
  $region1: #{tpu_custom_call.1} parent=0
    #allocation2 [shape = 'u8[32768]{0}', space=vmem, size = 0x8000, scoped, tag = 'input window, operand 0, single buffered']
    #allocation3 [shape = 's32[1]{0}', space=sflag, size = 0x4, scoped, tag = 'scoped memory for tpu_custom_call.1']
    #allocation4 [shape = 's32[1]{0}', space=sflag, size = 0x4, scoped, tag = 'scoped memory for tpu_custom_call.1']
    #allocation5 [shape = 'u8[4096]{0}', space=vmem, size = 0x1000, scoped, tag = 'input window, operand 1, single buffered']
    #allocation6 [shape = 's32[1]{0}', space=sflag, size = 0x4, scoped, tag = 'scoped memory for tpu_custom_call.1']
    #allocation7 [shape = 'u8[4096]{0}', space=vmem, size = 0x1000, scoped, tag = 'input window, operand 2, single buffered']
    #allocation8 [shape = 'u8[4096]{0}', space=vmem, size = 0x1000, scoped, tag = 'input window, operand 3, single buffered']
    #allocation9 [shape = 's32[1]{0}', space=sflag, size = 0x4, scoped, tag = 'scoped memory for tpu_custom_call.1']
    #allocation10 [shape = 'u8[8192]{0}', space=vmem, size = 0x2000, scoped, tag = 'input window, operand 4, single buffered']
    #allocation11 [shape = 'u8[65536]{0}', space=vmem, size = 0x10000, scoped, tag = 'input window, operand 5, single buffered']
    #allocation12 [shape = 's32[1]{0}', space=sflag, size = 0x4, scoped, tag = 'scoped memory for tpu_custom_call.1']
    #allocation13 [shape = 'u8[16384]{0}', space=vmem, size = 0x4000, scoped, tag = 'input window, operand 6, single buffered']
    #allocation14 [shape = 'u8[8192]{0}', space=vmem, size = 0x2000, scoped, tag = 'input window, operand 7, single buffered']
    #allocation15 [shape = 's32[1]{0}', space=sflag, size = 0x4, scoped, tag = 'scoped memory for tpu_custom_call.1']
    #allocation16 [shape = 'u8[32768]{0}', space=vmem, size = 0x8000, scoped, tag = 'input window, operand 8, single buffered']
    #allocation17 [shape = 'u8[32768]{0}', space=vmem, size = 0x8000, scoped, tag = 'output window, operand 0, single buffered']
    #allocation18 [shape = 'u8[4096]{0}', space=vmem, size = 0x1000, scoped, tag = 'output window, operand 1, single buffered']
    #allocation19 [shape = 's32[1]{0}', space=sflag, size = 0x4, scoped, tag = 'scoped memory for tpu_custom_call.1']
    #allocation20 [shape = 'u8[4096]{0}', space=vmem, size = 0x1000, scoped, tag = 'output window, operand 2, single buffered']
    #allocation21 [shape = 'u8[4096]{0}', space=vmem, size = 0x1000, scoped, tag = 'output window, operand 3, single buffered']
    #allocation22 [shape = 's32[1]{0}', space=sflag, size = 0x4, scoped, tag = 'scoped memory for tpu_custom_call.1']
    #allocation23 [shape = 'u8[8192]{0}', space=vmem, size = 0x2000, scoped, tag = 'output window, operand 4, single buffered']
    #allocation24 [shape = 'u8[65536]{0}', space=vmem, size = 0x10000, scoped, tag = 'output window, operand 5, single buffered']
    #allocation25 [shape = 's32[1]{0}', space=sflag, size = 0x4, scoped, tag = 'scoped memory for tpu_custom_call.1']
    %22 = vsyncpa [#allocation3], 0
    %23 = vsyncpa [#allocation6], 0
    %24 = vsyncpa [#allocation9], 0
    %25 = vsyncpa [#allocation12], 0
    %26 = vsyncpa [#allocation15], 0
    %27 = vsyncpa [#allocation4], 0
    %28 = vsyncpa [#allocation19], 0
    %29 = vsyncpa [#allocation22], 0
    %30 = vsyncpa [#allocation25], 0
    // Predicated region
    $region2: #{tpu_custom_call.1} parent=1 // pred_check
      _
    $region3: #{tpu_custom_call.1} parent=1 // pred_check_branch
      %32 = sbr.rel (0) target = $region5
    $region4: #{tpu_custom_call.1} parent=1 // pred_region
      %s34 = ssub.s32 1024, 1024
      %35 = vsyncadd [#allocation3], %s34
      %s36 = sshll.u32 [#allocation2], 4
      %s37 = int_to_ptr.vmem [resolvable:$true] %s36
      %42 = dma.hbm_to_vmem [thread:$0]  %s0, 1024, %s37, [#allocation3], 128, 128, 8
    $region5: #{tpu_custom_call.1} parent=1 // pred_fallthru
      _
    // Predicated region
    $region6: #{tpu_custom_call.1} parent=1 // pred_check
      _
    $region7: #{tpu_custom_call.1} parent=1 // pred_check_branch
      %44 = sbr.rel (0) target = $region9
    $region8: #{tpu_custom_call.1} parent=1 // pred_region
      %s46 = ssub.s32 128, 128
      %47 = vsyncadd [#allocation6], %s46
      %s49 = sshll.u32 [#allocation5], 4
      %s50 = int_to_ptr.vmem [resolvable:$true] %s49
      %52 = dma.hbm_to_vmem [thread:$0]  %s1, 128, %s50, [#allocation6]
    $region9: #{tpu_custom_call.1} parent=1 // pred_fallthru
      _
    // Predicated region
    $region10: #{tpu_custom_call.1} parent=1 // pred_check
      _
    $region11: #{tpu_custom_call.1} parent=1 // pred_check_branch
      %54 = sbr.rel (0) target = $region13
    $region12: #{tpu_custom_call.1} parent=1 // pred_region
      %s56 = ssub.s32 128, 128
      %57 = vsyncadd [#allocation6], %s56
      %s59 = sshll.u32 [#allocation7], 4
      %s60 = int_to_ptr.vmem [resolvable:$true] %s59
      %62 = dma.hbm_to_vmem [thread:$0]  %s2, 128, %s60, [#allocation6]
    $region13: #{tpu_custom_call.1} parent=1 // pred_fallthru
      _
    // Predicated region
    $region14: #{tpu_custom_call.1} parent=1 // pred_check
      _
    $region15: #{tpu_custom_call.1} parent=1 // pred_check_branch
      %64 = sbr.rel (0) target = $region17
    $region16: #{tpu_custom_call.1} parent=1 // pred_region
      %s66 = ssub.s32 128, 128
      %67 = vsyncadd [#allocation9], %s66
      %s69 = sshll.u32 [#allocation8], 4
      %s70 = int_to_ptr.vmem [resolvable:$true] %s69
      %72 = dma.hbm_to_vmem [thread:$0]  %s3, 128, %s70, [#allocation9]
    $region17: #{tpu_custom_call.1} parent=1 // pred_fallthru
      _
    // Predicated region
    $region18: #{tpu_custom_call.1} parent=1 // pred_check
      _
    $region19: #{tpu_custom_call.1} parent=1 // pred_check_branch
      %74 = sbr.rel (0) target = $region21
    $region20: #{tpu_custom_call.1} parent=1 // pred_region
      %s76 = ssub.s32 256, 256
      %77 = vsyncadd [#allocation9], %s76
      %s78 = sshll.u32 [#allocation10], 4
      %s79 = int_to_ptr.vmem [resolvable:$true] %s78
      %84 = dma.hbm_to_vmem [thread:$0]  %s4, 256, %s79, [#allocation9], 128, 128, 8
    $region21: #{tpu_custom_call.1} parent=1 // pred_fallthru
      _
    // Predicated region
    $region22: #{tpu_custom_call.1} parent=1 // pred_check
      _
    $region23: #{tpu_custom_call.1} parent=1 // pred_check_branch
      %86 = sbr.rel (0) target = $region25
    $region24: #{tpu_custom_call.1} parent=1 // pred_region
      %s88 = ssub.s32 2048, 2048
      %89 = vsyncadd [#allocation12], %s88
      %s90 = sshll.u32 [#allocation11], 4
      %s91 = int_to_ptr.vmem [resolvable:$true] %s90
      %96 = dma.hbm_to_vmem [thread:$0]  %s5, 2048, %s91, [#allocation12], 128, 128, 8
    $region25: #{tpu_custom_call.1} parent=1 // pred_fallthru
      _
    // Predicated region
    $region26: #{tpu_custom_call.1} parent=1 // pred_check
      _
    $region27: #{tpu_custom_call.1} parent=1 // pred_check_branch
      %98 = sbr.rel (0) target = $region29
    $region28: #{tpu_custom_call.1} parent=1 // pred_region
      %s100 = ssub.s32 512, 512
      %101 = vsyncadd [#allocation12], %s100
      %s102 = sshll.u32 [#allocation13], 4
      %s103 = int_to_ptr.vmem [resolvable:$true] %s102
      %108 = dma.hbm_to_vmem [thread:$0]  %s6, 512, %s103, [#allocation12], 128, 128, 8
    $region29: #{tpu_custom_call.1} parent=1 // pred_fallthru
      _
    // Predicated region
    $region30: #{tpu_custom_call.1} parent=1 // pred_check
      _
    $region31: #{tpu_custom_call.1} parent=1 // pred_check_branch
      %110 = sbr.rel (0) target = $region33
    $region32: #{tpu_custom_call.1} parent=1 // pred_region
      %s112 = ssub.s32 256, 256
      %113 = vsyncadd [#allocation15], %s112
      %s114 = sshll.u32 [#allocation14], 4
      %s115 = int_to_ptr.vmem [resolvable:$true] %s114
      %120 = dma.hbm_to_vmem [thread:$0]  %s7, 256, %s115, [#allocation15], 128, 128, 8
    $region33: #{tpu_custom_call.1} parent=1 // pred_fallthru
      _
    // Predicated region
    $region34: #{tpu_custom_call.1} parent=1 // pred_check
      _
    $region35: #{tpu_custom_call.1} parent=1 // pred_check_branch
      %122 = sbr.rel (0) target = $region37
    $region36: #{tpu_custom_call.1} parent=1 // pred_region
      %s124 = ssub.s32 1024, 1024
      %125 = vsyncadd [#allocation15], %s124
      %s126 = sshll.u32 [#allocation16], 4
      %s127 = int_to_ptr.vmem [resolvable:$true] %s126
      %132 = dma.hbm_to_vmem [thread:$0]  %s8, 1024, %s127, [#allocation15], 256, 256, 16
    $region37: #{tpu_custom_call.1} parent=1 // pred_fallthru
      _
    // Predicated region
    $region38: #{tpu_custom_call.1} parent=1 // pred_check
      _
    $region39: #{tpu_custom_call.1} parent=1 // pred_check_branch
      %134 = sbr.rel (0) target = $region41
    $region40: #{tpu_custom_call.1} parent=1 // pred_region
      _
    $region41: #{tpu_custom_call.1} parent=1 // pred_fallthru
      _
    // Predicated region
    $region42: #{tpu_custom_call.1} parent=1 // pred_check
      _
    $region43: #{tpu_custom_call.1} parent=1 // pred_check_branch
      %136 = sbr.rel (0) target = $region45
    $region44: #{tpu_custom_call.1} parent=1 // pred_region
      _
    $region45: #{tpu_custom_call.1} parent=1 // pred_fallthru
      _
    // Predicated region
    $region46: #{tpu_custom_call.1} parent=1 // pred_check
      _
    $region47: #{tpu_custom_call.1} parent=1 // pred_check_branch
      %138 = sbr.rel (0) target = $region49
    $region48: #{tpu_custom_call.1} parent=1 // pred_region
      %139 = dma.done [#allocation3], 1024
    $region49: #{tpu_custom_call.1} parent=1 // pred_fallthru
      _
    // Predicated region
    $region50: #{tpu_custom_call.1} parent=1 // pred_check
      _
    $region51: #{tpu_custom_call.1} parent=1 // pred_check_branch
      %141 = sbr.rel (0) target = $region53
    $region52: #{tpu_custom_call.1} parent=1 // pred_region
      %142 = dma.done [#allocation6], 128
    $region53: #{tpu_custom_call.1} parent=1 // pred_fallthru
      _
    // Predicated region
    $region54: #{tpu_custom_call.1} parent=1 // pred_check
      _
    $region55: #{tpu_custom_call.1} parent=1 // pred_check_branch
      %144 = sbr.rel (0) target = $region57
    $region56: #{tpu_custom_call.1} parent=1 // pred_region
      %145 = dma.done [#allocation6], 128
    $region57: #{tpu_custom_call.1} parent=1 // pred_fallthru
      _
    // Predicated region
    $region58: #{tpu_custom_call.1} parent=1 // pred_check
      _
    $region59: #{tpu_custom_call.1} parent=1 // pred_check_branch
      %147 = sbr.rel (0) target = $region61
    $region60: #{tpu_custom_call.1} parent=1 // pred_region
      %148 = dma.done [#allocation9], 128
    $region61: #{tpu_custom_call.1} parent=1 // pred_fallthru
      _
    // Predicated region
    $region62: #{tpu_custom_call.1} parent=1 // pred_check
      _
    $region63: #{tpu_custom_call.1} parent=1 // pred_check_branch
      %150 = sbr.rel (0) target = $region65
    $region64: #{tpu_custom_call.1} parent=1 // pred_region
      %151 = dma.done [#allocation9], 256
    $region65: #{tpu_custom_call.1} parent=1 // pred_fallthru
      _
    // Predicated region
    $region66: #{tpu_custom_call.1} parent=1 // pred_check
      _
    $region67: #{tpu_custom_call.1} parent=1 // pred_check_branch
      %153 = sbr.rel (0) target = $region69
    $region68: #{tpu_custom_call.1} parent=1 // pred_region
      %154 = dma.done [#allocation12], 2048
    $region69: #{tpu_custom_call.1} parent=1 // pred_fallthru
      _
    // Predicated region
    $region70: #{tpu_custom_call.1} parent=1 // pred_check
      _
    $region71: #{tpu_custom_call.1} parent=1 // pred_check_branch
      %156 = sbr.rel (0) target = $region73
    $region72: #{tpu_custom_call.1} parent=1 // pred_region
      %157 = dma.done [#allocation12], 512
    $region73: #{tpu_custom_call.1} parent=1 // pred_fallthru
      _
    // Predicated region
    $region74: #{tpu_custom_call.1} parent=1 // pred_check
      _
    $region75: #{tpu_custom_call.1} parent=1 // pred_check_branch
      %159 = sbr.rel (0) target = $region77
    $region76: #{tpu_custom_call.1} parent=1 // pred_region
      %160 = dma.done [#allocation15], 256
    $region77: #{tpu_custom_call.1} parent=1 // pred_fallthru
      _
    // Predicated region
    $region78: #{tpu_custom_call.1} parent=1 // pred_check
      _
    $region79: #{tpu_custom_call.1} parent=1 // pred_check_branch
      %162 = sbr.rel (0) target = $region81
    $region80: #{tpu_custom_call.1} parent=1 // pred_region
      %163 = dma.done [#allocation15], 1024
    $region81: #{tpu_custom_call.1} parent=1 // pred_fallthru
      _
    %v164 = vld [vmem:[#allocation5] sm:$0xff]
    %vm165 = vcmask 130048
    %166 = vst.msk [vmem:[#allocation18] sm:$0xff] %vm165, %v164
    %v167 = vld [vmem:[#allocation7] sm:$0xff]
    %vm168 = vcmask 261120
    %169 = vst.msk [vmem:[#allocation20] sm:$0xff] %vm168, %v167
    %v170 = vld [vmem:[#allocation8] sm:$0xff]
    %171 = vst.msk [vmem:[#allocation21] sm:$0xff] %vm168, %v170
    %v172 = vld [vmem:[#allocation10] sm:$0xff]
    %v173 = vld [vmem:[#allocation10 + $0x8] sm:$0xff]
    %174 = vst [vmem:[#allocation23] sm:$0xff] %v172
    %175 = vst [vmem:[#allocation23 + $0x8] sm:$0xff] %v173
    %v176 = vld [vmem:[#allocation11] sm:$0xff]
    %v177 = vld [vmem:[#allocation11 + $0x8] sm:$0xff]
    %v178 = vld [vmem:[#allocation11 + $0x10] sm:$0xff]
    %v179 = vld [vmem:[#allocation11 + $0x18] sm:$0xff]
    %v180 = vld [vmem:[#allocation11 + $0x20] sm:$0xff]
    %v181 = vld [vmem:[#allocation11 + $0x28] sm:$0xff]
    %v182 = vld [vmem:[#allocation11 + $0x30] sm:$0xff]
    %v183 = vld [vmem:[#allocation11 + $0x38] sm:$0xff]
    %v184 = vld [vmem:[#allocation11 + $0x40] sm:$0xff]
    %v185 = vld [vmem:[#allocation11 + $0x48] sm:$0xff]
    %v186 = vld [vmem:[#allocation11 + $0x50] sm:$0xff]
    %v187 = vld [vmem:[#allocation11 + $0x58] sm:$0xff]
    %v188 = vld [vmem:[#allocation11 + $0x60] sm:$0xff]
    %v189 = vld [vmem:[#allocation11 + $0x68] sm:$0xff]
    %v190 = vld [vmem:[#allocation11 + $0x70] sm:$0xff]
    %v191 = vld [vmem:[#allocation11 + $0x78] sm:$0xff]
    %192 = vst [vmem:[#allocation24] sm:$0xff] %v176
    %193 = vst [vmem:[#allocation24 + $0x8] sm:$0xff] %v177
    %194 = vst [vmem:[#allocation24 + $0x10] sm:$0xff] %v178
    %195 = vst [vmem:[#allocation24 + $0x18] sm:$0xff] %v179
    %196 = vst [vmem:[#allocation24 + $0x20] sm:$0xff] %v180
    %197 = vst [vmem:[#allocation24 + $0x28] sm:$0xff] %v181
    %198 = vst [vmem:[#allocation24 + $0x30] sm:$0xff] %v182
    %199 = vst [vmem:[#allocation24 + $0x38] sm:$0xff] %v183
    %200 = vst [vmem:[#allocation24 + $0x40] sm:$0xff] %v184
    %201 = vst [vmem:[#allocation24 + $0x48] sm:$0xff] %v185
    %202 = vst [vmem:[#allocation24 + $0x50] sm:$0xff] %v186
    %203 = vst [vmem:[#allocation24 + $0x58] sm:$0xff] %v187
    %204 = vst [vmem:[#allocation24 + $0x60] sm:$0xff] %v188
    %205 = vst [vmem:[#allocation24 + $0x68] sm:$0xff] %v189
    %206 = vst [vmem:[#allocation24 + $0x70] sm:$0xff] %v190
    %207 = vst [vmem:[#allocation24 + $0x78] sm:$0xff] %v191
    loop: start=0, step=1, limit=8
    $region82: #{tpu_custom_call.1} parent=1 // loop_pre_header
      _
    $region83: #{tpu_custom_call.1} parent=1 // loop_header
      %s209 = sphi 0, %s213
      %p210 = scmp.ge.s32.totalorder %s209, 8
    $region84: #{tpu_custom_call.1} parent=1 // loop_header_branch
      %212 = sbr.rel (%p210) target = $region88
    $region85: #{tpu_custom_call.1} parent=1 // loop_body
      %s214 = smul.u32 %s209, 8
      %s215 = scalar_lea.vmem [#allocation2], %s214
      %v216 = vld [vmem:[%s215] sm:$0xff]
      %v217 = vld [vmem:[#allocation24] sm:$0xff]
      %v218 = vld [vmem:[#allocation24 + $0x8] sm:$0xff]
      %v219 = vld [vmem:[#allocation24 + $0x10] sm:$0xff]
      %v220 = vld [vmem:[#allocation24 + $0x18] sm:$0xff]
      %v221 = vld [vmem:[#allocation24 + $0x20] sm:$0xff]
      %v222 = vld [vmem:[#allocation24 + $0x28] sm:$0xff]
      %v223 = vld [vmem:[#allocation24 + $0x30] sm:$0xff]
      %v224 = vld [vmem:[#allocation24 + $0x38] sm:$0xff]
      %v225 = vld [vmem:[#allocation24 + $0x40] sm:$0xff]
      %v226 = vld [vmem:[#allocation24 + $0x48] sm:$0xff]
      %v227 = vld [vmem:[#allocation24 + $0x50] sm:$0xff]
      %v228 = vld [vmem:[#allocation24 + $0x58] sm:$0xff]
      %v229 = vld [vmem:[#allocation24 + $0x60] sm:$0xff]
      %v230 = vld [vmem:[#allocation24 + $0x68] sm:$0xff]
      %v231 = vld [vmem:[#allocation24 + $0x70] sm:$0xff]
      %v232 = vld [vmem:[#allocation24 + $0x78] sm:$0xff]
      %v233 = vld [vmem:[#allocation20] sm:$0xff]
      %v234 = vld [vmem:[#allocation21] sm:$0xff]
      %v235 = vld [vmem:[#allocation13] sm:$0xff]
      %v236 = vld [vmem:[#allocation13 + $0x8] sm:$0xff]
      %v237 = vld [vmem:[#allocation13 + $0x10] sm:$0xff]
      %v238 = vld [vmem:[#allocation13 + $0x18] sm:$0xff]
      %v240 = vsel %vm168, %v233, 0
      %242 = vmatprep.subr.mxu0 0.0
      %243 = vmatpush1.msra.mxu0 0.0
      %244 = vmatprep.subr.mxu0 0.0
      %245 = vmatpush1.msra.mxu0 0.0
      %246 = vmatprep.subr.mxu0 0.0
      %247 = vmatpush1.msra.mxu0 0.0
      %248 = vmatprep.subr.mxu0 0.0
      %249 = vmatpush1.msra.mxu0 0.0
      %250 = vmatprep.subr.mxu0 0.0
      %251 = vmatpush1.msra.mxu0 0.0
      %252 = vmatprep.subr.mxu0 0.0
      %253 = vmatpush1.msra.mxu0 0.0
      %254 = vmatprep.subr.mxu0 0.0
      %255 = vmatpush1.msra.mxu0 0.0
      %256 = vmatprep.subr.mxu0 0.0
      %257 = vmatpush1.msra.mxu0 0.0
      %258 = vmatprep.subr.mxu0 0.0
      %259 = vmatpush1.msra.mxu0 0.0
      %260 = vmatprep.subr.mxu0 0.0
      %261 = vmatpush1.msra.mxu0 0.0
      %262 = vmatprep.subr.mxu0 0.0
      %263 = vmatpush1.msra.mxu0 0.0
      %264 = vmatprep.subr.mxu0 0.0
      %265 = vmatpush1.msra.mxu0 0.0
      %266 = vmatprep.subr.mxu0 0.0
      %267 = vmatpush1.msra.mxu0 %v238
      %268 = vmatprep.subr.mxu0 0.0
      %269 = vmatpush1.msra.mxu0 %v237
      %270 = vmatprep.subr.mxu0 0.0
      %271 = vmatpush1.msra.mxu0 %v236
      %272 = vmatprep.subr.mxu0 0.0
      %273 = vmatpush1.msra.mxu0 %v235
      %274 = vmatprep.subr.mxu0 0.0
      %275 = vmatpush2.msra.mxu0 0.0
      %276 = vmatprep.subr.mxu0 0.0
      %277 = vmatpush2.msra.mxu0 0.0
      %278 = vmatprep.subr.mxu0 0.0
      %279 = vmatpush2.msra.mxu0 0.0
      %280 = vmatprep.subr.mxu0 0.0
      %281 = vmatpush2.msra.mxu0 0.0
      %282 = vmatprep.subr.mxu0 0.0
      %283 = vmatpush2.msra.mxu0 0.0
      %284 = vmatprep.subr.mxu0 0.0
      %285 = vmatpush2.msra.mxu0 0.0
      %286 = vmatprep.subr.mxu0 0.0
      %287 = vmatpush2.msra.mxu0 0.0
      %288 = vmatprep.subr.mxu0 0.0
      %289 = vmatpush2.msra.mxu0 0.0
      %290 = vmatprep.subr.mxu0 0.0
      %291 = vmatpush2.msra.mxu0 0.0
      %292 = vmatprep.subr.mxu0 0.0
      %293 = vmatpush2.msra.mxu0 0.0
      %294 = vmatprep.subr.mxu0 0.0
      %295 = vmatpush2.msra.mxu0 0.0
      %296 = vmatprep.subr.mxu0 0.0
      %297 = vmatpush2.msra.mxu0 0.0
      %298 = vmatprep.subr.mxu0 0.0
      %299 = vmatpush2.msra.mxu0 0.0
      %300 = vmatprep.subr.mxu0 0.0
      %301 = vmatpush2.msra.mxu0 0.0
      %302 = vmatprep.subr.mxu0 0.0
      %303 = vmatpush2.msra.mxu0 0.0
      %304 = vmatprep.subr.mxu0 0.0
      %305 = vmatpush2.msra.mxu0 0.0
      %306 = vmatprep.mubr.f32.mxu0 0.0
      %307 = vmatmul.mubr.f32.gmra.mxu0 %v240
      %v308 = vpop.f32.mrf.mxu0
      %v309 = vadd.f32 0.0, %v308
      %v310 = vpop.f32.mrf.mxu0
      %311 = vdwg.mxu0
      %v312 = vadd.f32 %v216, %v309
      %v313 = vld [vmem:[#allocation18] sm:$0xff]
      %v314 = vld [vmem:[#allocation14] sm:$0xff]
      %v315 = vld [vmem:[#allocation14 + $0x8] sm:$0xff]
      %v317 = vsel %vm165, %v313, 0
      %319 = vmatprep.subr.mxu0 0.0
      %320 = vmatpush1.msra.mxu0 0.0
      %321 = vmatprep.subr.mxu0 0.0
      %322 = vmatpush1.msra.mxu0 0.0
      %323 = vmatprep.subr.mxu0 0.0
      %324 = vmatpush1.msra.mxu0 0.0
      %325 = vmatprep.subr.mxu0 0.0
      %326 = vmatpush1.msra.mxu0 0.0
      %327 = vmatprep.subr.mxu0 0.0
      %328 = vmatpush1.msra.mxu0 0.0
      %329 = vmatprep.subr.mxu0 0.0
      %330 = vmatpush1.msra.mxu0 0.0
      %331 = vmatprep.subr.mxu0 0.0
      %332 = vmatpush1.msra.mxu0 0.0
      %333 = vmatprep.subr.mxu0 0.0
      %334 = vmatpush1.msra.mxu0 0.0
      %335 = vmatprep.subr.mxu0 0.0
      %336 = vmatpush1.msra.mxu0 0.0
      %337 = vmatprep.subr.mxu0 0.0
      %338 = vmatpush1.msra.mxu0 0.0
      %339 = vmatprep.subr.mxu0 0.0
      %340 = vmatpush1.msra.mxu0 0.0
      %341 = vmatprep.subr.mxu0 0.0
      %342 = vmatpush1.msra.mxu0 0.0
      %343 = vmatprep.subr.mxu0 0.0
      %344 = vmatpush1.msra.mxu0 0.0
      %345 = vmatprep.subr.mxu0 0.0
      %346 = vmatpush1.msra.mxu0 0.0
      %347 = vmatprep.subr.mxu0 0.0
      %348 = vmatpush1.msra.mxu0 %v315
      %349 = vmatprep.subr.mxu0 0.0
      %350 = vmatpush1.msra.mxu0 %v314
      %351 = vmatprep.subr.mxu0 0.0
      %352 = vmatpush2.msra.mxu0 0.0
      %353 = vmatprep.subr.mxu0 0.0
      %354 = vmatpush2.msra.mxu0 0.0
      %355 = vmatprep.subr.mxu0 0.0
      %356 = vmatpush2.msra.mxu0 0.0
      %357 = vmatprep.subr.mxu0 0.0
      %358 = vmatpush2.msra.mxu0 0.0
      %359 = vmatprep.subr.mxu0 0.0
      %360 = vmatpush2.msra.mxu0 0.0
      %361 = vmatprep.subr.mxu0 0.0
      %362 = vmatpush2.msra.mxu0 0.0
      %363 = vmatprep.subr.mxu0 0.0
      %364 = vmatpush2.msra.mxu0 0.0
      %365 = vmatprep.subr.mxu0 0.0
      %366 = vmatpush2.msra.mxu0 0.0
      %367 = vmatprep.subr.mxu0 0.0
      %368 = vmatpush2.msra.mxu0 0.0
      %369 = vmatprep.subr.mxu0 0.0
      %370 = vmatpush2.msra.mxu0 0.0
      %371 = vmatprep.subr.mxu0 0.0
      %372 = vmatpush2.msra.mxu0 0.0
      %373 = vmatprep.subr.mxu0 0.0
      %374 = vmatpush2.msra.mxu0 0.0
      %375 = vmatprep.subr.mxu0 0.0
      %376 = vmatpush2.msra.mxu0 0.0
      %377 = vmatprep.subr.mxu0 0.0
      %378 = vmatpush2.msra.mxu0 0.0
      %379 = vmatprep.subr.mxu0 0.0
      %380 = vmatpush2.msra.mxu0 0.0
      %381 = vmatprep.subr.mxu0 0.0
      %382 = vmatpush2.msra.mxu0 0.0
      %383 = vmatprep.mubr.f32.mxu0 0.0
      %384 = vmatmul.mubr.f32.gmra.mxu0 %v317
      %v385 = vpop.f32.mrf.mxu0
      %v386 = vadd.f32 0.0, %v385
      %v387 = vpop.f32.mrf.mxu0
      %388 = vdwg.mxu0
      %v389 = vadd.f32 %v312, %v386
      %v390 = vmul.f32 %v389, 0.5
      %v391 = vtanh.pop %v390
      %v392 = vmul.f32 %v391, 0.5
      %v393 = vadd.f32 %v392, 0.5
      %v394 = vtanh.pop %v389
      %396 = vrot.lane.b32.xlu0 %v234, 32
      %v397 = vpop.permute.xlu0 %396
      %v399 = vmul.f32 %v393, %v397
      %401 = vrot.lane.b32.xlu0 %v394, 64
      %v402 = vpop.permute.xlu0 %401
      %v404 = vmul.f32 %v393, %v402
      %406 = vrot.lane.b32.xlu0 %v404, 32
      %v407 = vpop.permute.xlu0 %406
      %v409 = vadd.f32 %v399, %v407
      %v410 = vtanh.pop %v409
      %412 = vrot.lane.b32.xlu0 %v410, 64
      %v413 = vpop.permute.xlu0 %412
      %v415 = vmul.f32 %v393, %v413
      %417 = vrot.lane.b32.xlu0 %v415, 32
      %v418 = vpop.permute.xlu0 %417
      %420 = vst.msk [vmem:[#allocation20] sm:$0xff] %vm168, %v418
      %422 = vrot.lane.b32.xlu0 %v409, 96
      %v423 = vpop.permute.xlu0 %422
      %425 = vst.msk [vmem:[#allocation21] sm:$0xff] %vm168, %v423
      %v426 = vld [vmem:[#allocation16] sm:$0xff]
      %v427 = vld [vmem:[#allocation16 + $0x8] sm:$0xff]
      %v428 = vld [vmem:[#allocation16 + $0x10] sm:$0xff]
      %v429 = vld [vmem:[#allocation16 + $0x18] sm:$0xff]
      %v430 = vld [vmem:[#allocation16 + $0x20] sm:$0xff]
      %v431 = vld [vmem:[#allocation16 + $0x28] sm:$0xff]
      %v432 = vld [vmem:[#allocation16 + $0x30] sm:$0xff]
      %v433 = vld [vmem:[#allocation16 + $0x38] sm:$0xff]
      %v434 = vld [vmem:[%s9] sm:$0x3]
      %v436 = vlaneseq
      %v437 = vshrl.u32 %v436, 7
      %v438 = vsub.s32 0, %v437
      %v439 = vrot.slane %v434, %v438
      %v440 = vlaneseq
      %v441 = vshrl.u32 %v440, 7
      %v442 = vsub.s32 1, %v441
      %v443 = vrot.slane %v434, %v442
      %v446 = vsel %vm168, %v418, 0
      %448 = vmatprep.subr.mxu0 0.0
      %449 = vmatpush1.msra.mxu0 0.0
      %450 = vmatprep.subr.mxu0 0.0
      %451 = vmatpush1.msra.mxu0 0.0
      %452 = vmatprep.subr.mxu0 0.0
      %453 = vmatpush1.msra.mxu0 0.0
      %454 = vmatprep.subr.mxu0 0.0
      %455 = vmatpush1.msra.mxu0 0.0
      %456 = vmatprep.subr.mxu0 0.0
      %457 = vmatpush1.msra.mxu0 0.0
      %458 = vmatprep.subr.mxu0 0.0
      %459 = vmatpush1.msra.mxu0 0.0
      %460 = vmatprep.subr.mxu0 0.0
      %461 = vmatpush1.msra.mxu0 0.0
      %462 = vmatprep.subr.mxu0 0.0
      %463 = vmatpush1.msra.mxu0 0.0
      %464 = vmatprep.subr.mxu0 0.0
      %465 = vmatpush1.msra.mxu0 0.0
      %466 = vmatprep.subr.mxu0 0.0
      %467 = vmatpush1.msra.mxu0 0.0
      %468 = vmatprep.subr.mxu0 0.0
      %469 = vmatpush1.msra.mxu0 0.0
      %470 = vmatprep.subr.mxu0 0.0
      %471 = vmatpush1.msra.mxu0 0.0
      %472 = vmatprep.subr.mxu0 %v433
      %473 = vmatpush1.msra.mxu0 %v432
      %474 = vmatprep.subr.mxu0 %v431
      %475 = vmatpush1.msra.mxu0 %v430
      %476 = vmatprep.subr.mxu0 %v429
      %477 = vmatpush1.msra.mxu0 %v428
      %478 = vmatprep.subr.mxu0 %v427
      %479 = vmatpush1.msra.mxu0 %v426
      %480 = vmatprep.subr.mxu0 0.0
      %481 = vmatpush2.msra.mxu0 0.0
      %482 = vmatprep.subr.mxu0 0.0
      %483 = vmatpush2.msra.mxu0 0.0
      %484 = vmatprep.subr.mxu0 0.0
      %485 = vmatpush2.msra.mxu0 0.0
      %486 = vmatprep.subr.mxu0 0.0
      %487 = vmatpush2.msra.mxu0 0.0
      %488 = vmatprep.subr.mxu0 0.0
      %489 = vmatpush2.msra.mxu0 0.0
      %490 = vmatprep.subr.mxu0 0.0
      %491 = vmatpush2.msra.mxu0 0.0
      %492 = vmatprep.subr.mxu0 0.0
      %493 = vmatpush2.msra.mxu0 0.0
      %494 = vmatprep.subr.mxu0 0.0
      %495 = vmatpush2.msra.mxu0 0.0
      %496 = vmatprep.subr.mxu0 0.0
      %497 = vmatpush2.msra.mxu0 0.0
      %498 = vmatprep.subr.mxu0 0.0
      %499 = vmatpush2.msra.mxu0 0.0
      %500 = vmatprep.subr.mxu0 0.0
      %501 = vmatpush2.msra.mxu0 0.0
      %502 = vmatprep.subr.mxu0 0.0
      %503 = vmatpush2.msra.mxu0 0.0
      %504 = vmatprep.subr.mxu0 0.0
      %505 = vmatpush2.msra.mxu0 0.0
      %506 = vmatprep.subr.mxu0 0.0
      %507 = vmatpush2.msra.mxu0 0.0
      %508 = vmatprep.subr.mxu0 0.0
      %509 = vmatpush2.msra.mxu0 0.0
      %510 = vmatprep.subr.mxu0 0.0
      %511 = vmatpush2.msra.mxu0 0.0
      %512 = vmatprep.mubr.f32.mxu0 0.0
      %513 = vmatmul.mubr.f32.gmra.mxu0 %v446
      %v514 = vpop.f32.mrf.mxu0
      %v515 = vadd.f32 %v439, %v514
      %v516 = vpop.f32.mrf.mxu0
      %v517 = vadd.f32 %v443, %v516
      %518 = vdwg.mxu0
      %v519 = vmax.f32 %v515, 0.0
      %v520 = vand.u32 2147483647, %v515
      %v521 = vsub.f32 0.0, %v520
      %v522 = vmul.f32 %v521, 1.442695
      %v523 = vpow.pop %v522
      %v524 = vadd.f32 %v523, 1.0
      %v525 = vlog2.pop %v524
      %v526 = vmul.f32 %v525, 0.6931472
      %v527 = vadd.f32 %v519, %v526
      %v528 = vmul.f32 %v515, 0.5
      %v529 = vtanh.pop %v528
      %v530 = vmul.f32 %v529, 0.5
      %v531 = vadd.f32 %v530, 0.5
      %vm532 = vcmask 171152
      %v533 = vsel %vm532, %v515, -inf
      %534 = vmax.xlane.f32.xlu0 %v533
      %v535 = vpop.xlane.xlu0 %534
      %v536 = vsub.f32 %v515, %v535
      %v537 = vmul.f32 %v536, 1.442695
      %v538 = vpow.pop %v537
      %540 = vrot.lane.b32.xlu0 %v538, 110
      %v541 = vpop.permute.xlu0 %540
      %vm543 = vcmask 23552
      %v544 = vsel %vm543, %v541, 0.0
      %545 = vadd.xlane.f32.xlu0 %v544
      %v546 = vpop.xlane.xlu0 %545
      %v547 = vrcp.pop %v546
      %v548 = vmul.f32 %v538, %v547
      %v549 = vadd.f32 %v527, 1.0
      %v550 = vld [vmem:[#allocation23] sm:$0xff]
      %v551 = vadd.f32 %v217, 1e-16
      %v552 = vadd.f32 %v218, 1e-16
      %v553 = vadd.f32 %v219, 1e-16
      %v554 = vadd.f32 %v220, 1e-16
      %v555 = vadd.f32 %v221, 1e-16
      %v556 = vadd.f32 %v222, 1e-16
      %v557 = vadd.f32 %v223, 1e-16
      %v558 = vadd.f32 %v224, 1e-16
      %v559 = vadd.f32 %v225, 1e-16
      %v560 = vadd.f32 %v226, 1e-16
      %v561 = vadd.f32 %v227, 1e-16
      %v562 = vadd.f32 %v228, 1e-16
      %v563 = vadd.f32 %v229, 1e-16
      %v564 = vadd.f32 %v230, 1e-16
      %v565 = vadd.f32 %v231, 1e-16
      %v566 = vadd.f32 %v232, 1e-16
      %v567 = vadd.f32 %v515, 1e-16
      %v568 = vlaneseq
      %v569 = vshrl.u32 %v568, 7
      %v570 = vsub.s32 0, %v569
      %v571 = vrot.slane %v567, %v570
      %573 = vbcast.lane.b32.xlu0 %v571, 256
      %v574 = vpop.permute.xlu0 %573
      %s576 = sor.u32 256, 8
      %577 = vbcast.lane.b32.xlu0 %v571, %s576
      %v578 = vpop.permute.xlu0 %577
      %v579 = vlaneseq
      %v580 = vshrl.u32 %v579, 7
      %v581 = vsub.s32 1, %v580
      %v582 = vrot.slane %v567, %v581
      %584 = vbcast.lane.b32.xlu0 %v582, 256
      %v585 = vpop.permute.xlu0 %584
      %s587 = sor.u32 256, 8
      %588 = vbcast.lane.b32.xlu0 %v582, %s587
      %v589 = vpop.permute.xlu0 %588
      %v590 = vlaneseq
      %v591 = vshrl.u32 %v590, 7
      %v592 = vsub.s32 2, %v591
      %v593 = vrot.slane %v567, %v592
      %595 = vbcast.lane.b32.xlu0 %v593, 256
      %v596 = vpop.permute.xlu0 %595
      %s598 = sor.u32 256, 8
      %599 = vbcast.lane.b32.xlu0 %v593, %s598
      %v600 = vpop.permute.xlu0 %599
      %v601 = vlaneseq
      %v602 = vshrl.u32 %v601, 7
      %v603 = vsub.s32 3, %v602
      %v604 = vrot.slane %v567, %v603
      %606 = vbcast.lane.b32.xlu0 %v604, 256
      %v607 = vpop.permute.xlu0 %606
      %s609 = sor.u32 256, 8
      %610 = vbcast.lane.b32.xlu0 %v604, %s609
      %v611 = vpop.permute.xlu0 %610
      %v612 = vlaneseq
      %v613 = vshrl.u32 %v612, 7
      %v614 = vsub.s32 4, %v613
      %v615 = vrot.slane %v567, %v614
      %617 = vbcast.lane.b32.xlu0 %v615, 256
      %v618 = vpop.permute.xlu0 %617
      %s620 = sor.u32 256, 8
      %621 = vbcast.lane.b32.xlu0 %v615, %s620
      %v622 = vpop.permute.xlu0 %621
      %v623 = vlaneseq
      %v624 = vshrl.u32 %v623, 7
      %v625 = vsub.s32 5, %v624
      %v626 = vrot.slane %v567, %v625
      %628 = vbcast.lane.b32.xlu0 %v626, 256
      %v629 = vpop.permute.xlu0 %628
      %s631 = sor.u32 256, 8
      %632 = vbcast.lane.b32.xlu0 %v626, %s631
      %v633 = vpop.permute.xlu0 %632
      %v634 = vlaneseq
      %v635 = vshrl.u32 %v634, 7
      %v636 = vsub.s32 6, %v635
      %v637 = vrot.slane %v567, %v636
      %639 = vbcast.lane.b32.xlu0 %v637, 256
      %v640 = vpop.permute.xlu0 %639
      %s642 = sor.u32 256, 8
      %643 = vbcast.lane.b32.xlu0 %v637, %s642
      %v644 = vpop.permute.xlu0 %643
      %v645 = vlaneseq
      %v646 = vshrl.u32 %v645, 7
      %v647 = vsub.s32 7, %v646
      %v648 = vrot.slane %v567, %v647
      %650 = vbcast.lane.b32.xlu0 %v648, 256
      %v651 = vpop.permute.xlu0 %650
      %s653 = sor.u32 256, 8
      %654 = vbcast.lane.b32.xlu0 %v648, %s653
      %v655 = vpop.permute.xlu0 %654
      %v656 = vmul.f32 %v551, %v574
      %v657 = vmul.f32 %v552, %v578
      %v658 = vmul.f32 %v553, %v585
      %v659 = vmul.f32 %v554, %v589
      %v660 = vmul.f32 %v555, %v596
      %v661 = vmul.f32 %v556, %v600
      %v662 = vmul.f32 %v557, %v607
      %v663 = vmul.f32 %v558, %v611
      %v664 = vmul.f32 %v559, %v618
      %v665 = vmul.f32 %v560, %v622
      %v666 = vmul.f32 %v561, %v629
      %v667 = vmul.f32 %v562, %v633
      %v668 = vmul.f32 %v563, %v640
      %v669 = vmul.f32 %v564, %v644
      %v670 = vmul.f32 %v565, %v651
      %v671 = vmul.f32 %v566, %v655
      %v672 = vadd.f32 %v656, %v657
      %v673 = vrot.slane %v672, 4
      %v674 = vadd.f32 %v672, %v673
      %v675 = vrot.slane %v674, 2
      %v676 = vadd.f32 %v674, %v675
      %v677 = vrot.slane %v676, 1
      %v678 = vadd.f32 %v676, %v677
      %v679 = vadd.f32 %v658, %v659
      %v680 = vrot.slane %v679, 4
      %v681 = vadd.f32 %v679, %v680
      %v682 = vrot.slane %v681, 2
      %v683 = vadd.f32 %v681, %v682
      %v684 = vrot.slane %v683, 1
      %v685 = vadd.f32 %v683, %v684
      %v686 = vadd.f32 %v660, %v661
      %v687 = vrot.slane %v686, 4
      %v688 = vadd.f32 %v686, %v687
      %v689 = vrot.slane %v688, 2
      %v690 = vadd.f32 %v688, %v689
      %v691 = vrot.slane %v690, 1
      %v692 = vadd.f32 %v690, %v691
      %v693 = vadd.f32 %v662, %v663
      %v694 = vrot.slane %v693, 4
      %v695 = vadd.f32 %v693, %v694
      %v696 = vrot.slane %v695, 2
      %v697 = vadd.f32 %v695, %v696
      %v698 = vrot.slane %v697, 1
      %v699 = vadd.f32 %v697, %v698
      %v700 = vadd.f32 %v664, %v665
      %v701 = vrot.slane %v700, 4
      %v702 = vadd.f32 %v700, %v701
      %v703 = vrot.slane %v702, 2
      %v704 = vadd.f32 %v702, %v703
      %v705 = vrot.slane %v704, 1
      %v706 = vadd.f32 %v704, %v705
      %v707 = vadd.f32 %v666, %v667
      %v708 = vrot.slane %v707, 4
      %v709 = vadd.f32 %v707, %v708
      %v710 = vrot.slane %v709, 2
      %v711 = vadd.f32 %v709, %v710
      %v712 = vrot.slane %v711, 1
      %v713 = vadd.f32 %v711, %v712
      %v714 = vadd.f32 %v668, %v669
      %v715 = vrot.slane %v714, 4
      %v716 = vadd.f32 %v714, %v715
      %v717 = vrot.slane %v716, 2
      %v718 = vadd.f32 %v716, %v717
      %v719 = vrot.slane %v718, 1
      %v720 = vadd.f32 %v718, %v719
      %v721 = vadd.f32 %v670, %v671
      %v722 = vrot.slane %v721, 4
      %v723 = vadd.f32 %v721, %v722
      %v724 = vrot.slane %v723, 2
      %v725 = vadd.f32 %v723, %v724
      %v726 = vrot.slane %v725, 1
      %v727 = vadd.f32 %v725, %v726
      %v728 = vmul.f32 %v551, %v551
      %v729 = vmul.f32 %v552, %v552
      %v730 = vmul.f32 %v553, %v553
      %v731 = vmul.f32 %v554, %v554
      %v732 = vmul.f32 %v555, %v555
      %v733 = vmul.f32 %v556, %v556
      %v734 = vmul.f32 %v557, %v557
      %v735 = vmul.f32 %v558, %v558
      %v736 = vmul.f32 %v559, %v559
      %v737 = vmul.f32 %v560, %v560
      %v738 = vmul.f32 %v561, %v561
      %v739 = vmul.f32 %v562, %v562
      %v740 = vmul.f32 %v563, %v563
      %v741 = vmul.f32 %v564, %v564
      %v742 = vmul.f32 %v565, %v565
      %v743 = vmul.f32 %v566, %v566
      %v744 = vadd.f32 %v728, %v729
      %v745 = vrot.slane %v744, 4
      %v746 = vadd.f32 %v744, %v745
      %v747 = vrot.slane %v746, 2
      %v748 = vadd.f32 %v746, %v747
      %v749 = vrot.slane %v748, 1
      %v750 = vadd.f32 %v748, %v749
      %v751 = vadd.f32 %v730, %v731
      %v752 = vrot.slane %v751, 4
      %v753 = vadd.f32 %v751, %v752
      %v754 = vrot.slane %v753, 2
      %v755 = vadd.f32 %v753, %v754
      %v756 = vrot.slane %v755, 1
      %v757 = vadd.f32 %v755, %v756
      %v758 = vadd.f32 %v732, %v733
      %v759 = vrot.slane %v758, 4
      %v760 = vadd.f32 %v758, %v759
      %v761 = vrot.slane %v760, 2
      %v762 = vadd.f32 %v760, %v761
      %v763 = vrot.slane %v762, 1
      %v764 = vadd.f32 %v762, %v763
      %v765 = vadd.f32 %v734, %v735
      %v766 = vrot.slane %v765, 4
      %v767 = vadd.f32 %v765, %v766
      %v768 = vrot.slane %v767, 2
      %v769 = vadd.f32 %v767, %v768
      %v770 = vrot.slane %v769, 1
      %v771 = vadd.f32 %v769, %v770
      %v772 = vadd.f32 %v736, %v737
      %v773 = vrot.slane %v772, 4
      %v774 = vadd.f32 %v772, %v773
      %v775 = vrot.slane %v774, 2
      %v776 = vadd.f32 %v774, %v775
      %v777 = vrot.slane %v776, 1
      %v778 = vadd.f32 %v776, %v777
      %v779 = vadd.f32 %v738, %v739
      %v780 = vrot.slane %v779, 4
      %v781 = vadd.f32 %v779, %v780
      %v782 = vrot.slane %v781, 2
      %v783 = vadd.f32 %v781, %v782
      %v784 = vrot.slane %v783, 1
      %v785 = vadd.f32 %v783, %v784
      %v786 = vadd.f32 %v740, %v741
      %v787 = vrot.slane %v786, 4
      %v788 = vadd.f32 %v786, %v787
      %v789 = vrot.slane %v788, 2
      %v790 = vadd.f32 %v788, %v789
      %v791 = vrot.slane %v790, 1
      %v792 = vadd.f32 %v790, %v791
      %v793 = vadd.f32 %v742, %v743
      %v794 = vrot.slane %v793, 4
      %v795 = vadd.f32 %v793, %v794
      %v796 = vrot.slane %v795, 2
      %v797 = vadd.f32 %v795, %v796
      %v798 = vrot.slane %v797, 1
      %v799 = vadd.f32 %v797, %v798
      %v800 = vrsqrt.pop %v750
      %v801 = vmul.f32 %v750, %v800
      %vm802 = vcmp.eq.f32.partialorder %v750, inf
      %v803 = vsel %vm802, %v750, %v801
      %vm804 = vcmp.eq.f32.partialorder %v750, 0.0
      %v805 = vand.u32 %v750, 2147483648
      %v806 = vsel %vm804, %v805, %v803
      %v807 = vrsqrt.pop %v757
      %v808 = vmul.f32 %v757, %v807
      %vm809 = vcmp.eq.f32.partialorder %v757, inf
      %v810 = vsel %vm809, %v757, %v808
      %vm811 = vcmp.eq.f32.partialorder %v757, 0.0
      %v812 = vand.u32 %v757, 2147483648
      %v813 = vsel %vm811, %v812, %v810
      %v814 = vrsqrt.pop %v764
      %v815 = vmul.f32 %v764, %v814
      %vm816 = vcmp.eq.f32.partialorder %v764, inf
      %v817 = vsel %vm816, %v764, %v815
      %vm818 = vcmp.eq.f32.partialorder %v764, 0.0
      %v819 = vand.u32 %v764, 2147483648
      %v820 = vsel %vm818, %v819, %v817
      %v821 = vrsqrt.pop %v771
      %v822 = vmul.f32 %v771, %v821
      %vm823 = vcmp.eq.f32.partialorder %v771, inf
      %v824 = vsel %vm823, %v771, %v822
      %vm825 = vcmp.eq.f32.partialorder %v771, 0.0
      %v826 = vand.u32 %v771, 2147483648
      %v827 = vsel %vm825, %v826, %v824
      %v828 = vrsqrt.pop %v778
      %v829 = vmul.f32 %v778, %v828
      %vm830 = vcmp.eq.f32.partialorder %v778, inf
      %v831 = vsel %vm830, %v778, %v829
      %vm832 = vcmp.eq.f32.partialorder %v778, 0.0
      %v833 = vand.u32 %v778, 2147483648
      %v834 = vsel %vm832, %v833, %v831
      %v835 = vrsqrt.pop %v785
      %v836 = vmul.f32 %v785, %v835
      %vm837 = vcmp.eq.f32.partialorder %v785, inf
      %v838 = vsel %vm837, %v785, %v836
      %vm839 = vcmp.eq.f32.partialorder %v785, 0.0
      %v840 = vand.u32 %v785, 2147483648
      %v841 = vsel %vm839, %v840, %v838
      %v842 = vrsqrt.pop %v792
      %v843 = vmul.f32 %v792, %v842
      %vm844 = vcmp.eq.f32.partialorder %v792, inf
      %v845 = vsel %vm844, %v792, %v843
      %vm846 = vcmp.eq.f32.partialorder %v792, 0.0
      %v847 = vand.u32 %v792, 2147483648
      %v848 = vsel %vm846, %v847, %v845
      %v849 = vrsqrt.pop %v799
      %v850 = vmul.f32 %v799, %v849
      %vm851 = vcmp.eq.f32.partialorder %v799, inf
      %v852 = vsel %vm851, %v799, %v850
      %vm853 = vcmp.eq.f32.partialorder %v799, 0.0
      %v854 = vand.u32 %v799, 2147483648
      %v855 = vsel %vm853, %v854, %v852
      %v856 = vmul.f32 %v567, %v567
      %v857 = vsel %vm165, %v856, 0.0
      %858 = vadd.xlane.f32.xlu0 %v857
      %v859 = vpop.xlane.xlu0 %858
      %v860 = vrsqrt.pop %v859
      %v861 = vmul.f32 %v859, %v860
      %vm862 = vcmp.eq.f32.partialorder %v859, inf
      %v863 = vsel %vm862, %v859, %v861
      %vm864 = vcmp.eq.f32.partialorder %v859, 0.0
      %v865 = vand.u32 %v859, 2147483648
      %v866 = vsel %vm864, %v865, %v863
      %v867 = vmax.f32 %v806, 1e-08
      %v868 = vmax.f32 %v813, 1e-08
      %v869 = vmax.f32 %v820, 1e-08
      %v870 = vmax.f32 %v827, 1e-08
      %v871 = vmax.f32 %v834, 1e-08
      %v872 = vmax.f32 %v841, 1e-08
      %v873 = vmax.f32 %v848, 1e-08
      %v874 = vmax.f32 %v855, 1e-08
      %v875 = vmax.f32 %v866, 1e-08
      %v877 = vrot.slane %v875, 1
      %v878 = vrot.slane %v875, 2
      %v879 = vrot.slane %v875, 3
      %v880 = vrot.slane %v875, 4
      %v881 = vrot.slane %v875, 5
      %v882 = vrot.slane %v875, 6
      %v883 = vrot.slane %v875, 7
      %v892 = vmul.f32 %v867, %v875
      %v893 = vmul.f32 %v868, %v877
      %v894 = vmul.f32 %v869, %v878
      %v895 = vmul.f32 %v870, %v879
      %v896 = vmul.f32 %v871, %v880
      %v897 = vmul.f32 %v872, %v881
      %v898 = vmul.f32 %v873, %v882
      %v899 = vmul.f32 %v874, %v883
      %v900 = vrcp.pop %v892
      %v901 = vmul.f32 %v678, %v900
      %v902 = vrcp.pop %v893
      %v903 = vmul.f32 %v685, %v902
      %v904 = vrcp.pop %v894
      %v905 = vmul.f32 %v692, %v904
      %v906 = vrcp.pop %v895
      %v907 = vmul.f32 %v699, %v906
      %v908 = vrcp.pop %v896
      %v909 = vmul.f32 %v706, %v908
      %v910 = vrcp.pop %v897
      %v911 = vmul.f32 %v713, %v910
      %v912 = vrcp.pop %v898
      %v913 = vmul.f32 %v720, %v912
      %v914 = vrcp.pop %v899
      %v915 = vmul.f32 %v727, %v914
      %917 = vset.pattern.permute.xlu0 16
      %918 = vperm.xlu0 %917, %v527
      %v919 = vpop.permute.xlu0 %918
      %v929 = vrot.slane %v903, 7
      %vm930 = vcmask 1041409
      %v931 = vsel %vm930, %v929, %v901
      %v932 = vrot.slane %v905, 6
      %vm933 = vcmask 1042434
      %v934 = vsel %vm933, %v932, %v931
      %v935 = vrot.slane %v907, 5
      %vm936 = vcmask 1043459
      %v937 = vsel %vm936, %v935, %v934
      %v938 = vrot.slane %v909, 4
      %vm939 = vcmask 1044484
      %v940 = vsel %vm939, %v938, %v937
      %v941 = vrot.slane %v911, 3
      %vm942 = vcmask 1045509
      %v943 = vsel %vm942, %v941, %v940
      %v944 = vrot.slane %v913, 2
      %vm945 = vcmask 1046534
      %v946 = vsel %vm945, %v944, %v943
      %v947 = vrot.slane %v915, 1
      %vm948 = vcmask 1047559
      %v949 = vsel %vm948, %v947, %v946
      %v951 = vmul.f32 %v919, %v949
      %952 = vmax.xlane.f32.xlu0 %v951
      %v953 = vpop.xlane.xlu0 %952
      %v954 = vsub.f32 %v951, %v953
      %v955 = vmul.f32 %v954, 1.442695
      %v956 = vpow.pop %v955
      %957 = vadd.xlane.f32.xlu0 %v956
      %v958 = vpop.xlane.xlu0 %957
      %v959 = vrcp.pop %v958
      %v960 = vmul.f32 %v956, %v959
      %962 = vset.pattern.permute.xlu0 17
      %963 = vperm.xlu0 %962, %v531
      %v964 = vpop.permute.xlu0 %963
      %v966 = vmul.f32 %v964, %v960
      %v967 = vsub.f32 1.0, %v531
      %969 = vset.pattern.permute.xlu0 17
      %970 = vperm.xlu0 %969, %v967
      %v971 = vpop.permute.xlu0 %970
      %v973 = vmul.f32 %v971, %v550
      %v974 = vadd.f32 %v966, %v973
      %975 = vrot.lane.b32.xlu0 %v974, 1
      %v976 = vpop.permute.xlu0 %975
      %977 = vrot.lane.b32.xlu0 %v974, 127
      %v978 = vpop.permute.xlu0 %977
      %980 = vset.pattern.permute.xlu0 18
      %981 = vperm.xlu0 %980, %v548
      %v982 = vpop.permute.xlu0 %981
      %v984 = vmul.f32 %v976, %v982
      %985 = vset.pattern.permute.xlu0 19
      %986 = vperm.xlu0 %985, %v548
      %v987 = vpop.permute.xlu0 %986
      %v989 = vmul.f32 %v974, %v987
      %v990 = vadd.f32 %v984, %v989
      %991 = vset.pattern.permute.xlu0 20
      %992 = vperm.xlu0 %991, %v548
      %v993 = vpop.permute.xlu0 %992
      %v995 = vmul.f32 %v978, %v993
      %v996 = vadd.f32 %v990, %v995
      %v997 = vadd.f32 %v996, 1e-16
      %v998 = vlog2.pop %v997
      %v999 = vmul.f32 %v998, 0.6931472
      %1001 = vset.pattern.permute.xlu0 21
      %1002 = vperm.xlu0 %1001, %v549
      %v1003 = vpop.permute.xlu0 %1002
      %v1005 = vmul.f32 %v1003, %v999
      %v1006 = vmul.f32 %v1005, 1.442695
      %v1007 = vpow.pop %v1006
      %1008 = vadd.xlane.f32.xlu0 %v1007
      %v1009 = vpop.xlane.xlu0 %1008
      %v1010 = vadd.f32 %v1009, 1e-16
      %v1011 = vrcp.pop %v1010
      %v1012 = vmul.f32 %v1007, %v1011
      %v1014 = vcombine.high %v1012, %v1012
      %v1016 = vunpack.c.l.s4 1966171168
      %v1017 = vunpack.c.0.s8 %v1016
      %v1018 = vlaneseq
      %v1019 = vshrl.u32 %v1018, 7
      %v1020 = vsub.s32 %v1017, %v1019
      %v1021 = vrot.slane %v1012, %v1020
      %v1023 = vunpack.c.l.s4 1966171168
      %v1024 = vunpack.c.0.s8 %v1023
      %v1025 = vlaneseq
      %v1026 = vshrl.u32 %v1025, 7
      %v1027 = vsub.s32 %v1024, %v1026
      %v1028 = vrot.slane %v1014, %v1027
      %v1029 = vcombine.high %v1021, %v1021
      %v1030 = vcombine.high %v1028, %v1028
      %v1032 = vunpack.c.l.s4 1966171168
      %v1033 = vunpack.c.0.s8 %v1032
      %v1034 = vlaneseq
      %v1035 = vshrl.u32 %v1034, 7
      %v1036 = vsub.s32 %v1033, %v1035
      %v1037 = vrot.slane %v1021, %v1036
      %v1039 = vunpack.c.l.s4 1966171168
      %v1040 = vunpack.c.0.s8 %v1039
      %v1041 = vlaneseq
      %v1042 = vshrl.u32 %v1041, 7
      %v1043 = vsub.s32 %v1040, %v1042
      %v1044 = vrot.slane %v1028, %v1043
      %v1046 = vunpack.c.l.s4 1966171168
      %v1047 = vunpack.c.0.s8 %v1046
      %v1048 = vlaneseq
      %v1049 = vshrl.u32 %v1048, 7
      %v1050 = vsub.s32 %v1047, %v1049
      %v1051 = vrot.slane %v1029, %v1050
      %v1053 = vunpack.c.l.s4 1966171168
      %v1054 = vunpack.c.0.s8 %v1053
      %v1055 = vlaneseq
      %v1056 = vshrl.u32 %v1055, 7
      %v1057 = vsub.s32 %v1054, %v1056
      %v1058 = vrot.slane %v1030, %v1057
      %v1059 = vcombine.high %v1037, %v1037
      %v1060 = vcombine.high %v1044, %v1044
      %v1061 = vcombine.high %v1051, %v1051
      %v1062 = vcombine.high %v1058, %v1058
      %v1063 = vlaneseq
      %v1064 = vshrl.u32 %v1063, 7
      %v1065 = vsub.s32 0, %v1064
      %v1066 = vrot.slane %v1037, %v1065
      %v1067 = vlaneseq
      %v1068 = vshrl.u32 %v1067, 7
      %v1069 = vsub.s32 0, %v1068
      %v1070 = vrot.slane %v1051, %v1069
      %v1071 = vlaneseq
      %v1072 = vshrl.u32 %v1071, 7
      %v1073 = vsub.s32 0, %v1072
      %v1074 = vrot.slane %v1059, %v1073
      %v1075 = vlaneseq
      %v1076 = vshrl.u32 %v1075, 7
      %v1077 = vsub.s32 0, %v1076
      %v1078 = vrot.slane %v1061, %v1077
      %v1079 = vlaneseq
      %v1080 = vshrl.u32 %v1079, 7
      %v1081 = vsub.s32 0, %v1080
      %v1082 = vrot.slane %v1044, %v1081
      %v1083 = vlaneseq
      %v1084 = vshrl.u32 %v1083, 7
      %v1085 = vsub.s32 0, %v1084
      %v1086 = vrot.slane %v1058, %v1085
      %v1087 = vlaneseq
      %v1088 = vshrl.u32 %v1087, 7
      %v1089 = vsub.s32 0, %v1088
      %v1090 = vrot.slane %v1060, %v1089
      %v1091 = vlaneseq
      %v1092 = vshrl.u32 %v1091, 7
      %v1093 = vsub.s32 0, %v1092
      %v1094 = vrot.slane %v1062, %v1093
      %v1103 = vmul.f32 %v1066, %v217
      %v1104 = vmul.f32 %v1066, %v218
      %v1105 = vmul.f32 %v1070, %v219
      %v1106 = vmul.f32 %v1070, %v220
      %v1107 = vmul.f32 %v1074, %v221
      %v1108 = vmul.f32 %v1074, %v222
      %v1109 = vmul.f32 %v1078, %v223
      %v1110 = vmul.f32 %v1078, %v224
      %v1111 = vmul.f32 %v1082, %v225
      %v1112 = vmul.f32 %v1082, %v226
      %v1113 = vmul.f32 %v1086, %v227
      %v1114 = vmul.f32 %v1086, %v228
      %v1115 = vmul.f32 %v1090, %v229
      %v1116 = vmul.f32 %v1090, %v230
      %v1117 = vmul.f32 %v1094, %v231
      %v1118 = vmul.f32 %v1094, %v232
      %1119 = vadd.xlane.f32.xlu0 %v1103
      %v1120 = vpop.xlane.xlu0 %1119
      %1121 = vadd.xlane.f32.xlu0 %v1104
      %v1122 = vpop.xlane.xlu0 %1121
      %1123 = vadd.xlane.f32.xlu0 %v1105
      %v1124 = vpop.xlane.xlu0 %1123
      %1125 = vadd.xlane.f32.xlu0 %v1106
      %v1126 = vpop.xlane.xlu0 %1125
      %1127 = vadd.xlane.f32.xlu0 %v1107
      %v1128 = vpop.xlane.xlu0 %1127
      %1129 = vadd.xlane.f32.xlu0 %v1108
      %v1130 = vpop.xlane.xlu0 %1129
      %1131 = vadd.xlane.f32.xlu0 %v1109
      %v1132 = vpop.xlane.xlu0 %1131
      %1133 = vadd.xlane.f32.xlu0 %v1110
      %v1134 = vpop.xlane.xlu0 %1133
      %1135 = vadd.xlane.f32.xlu0 %v1111
      %v1136 = vpop.xlane.xlu0 %1135
      %1137 = vadd.xlane.f32.xlu0 %v1112
      %v1138 = vpop.xlane.xlu0 %1137
      %1139 = vadd.xlane.f32.xlu0 %v1113
      %v1140 = vpop.xlane.xlu0 %1139
      %1141 = vadd.xlane.f32.xlu0 %v1114
      %v1142 = vpop.xlane.xlu0 %1141
      %1143 = vadd.xlane.f32.xlu0 %v1115
      %v1144 = vpop.xlane.xlu0 %1143
      %1145 = vadd.xlane.f32.xlu0 %v1116
      %v1146 = vpop.xlane.xlu0 %1145
      %1147 = vadd.xlane.f32.xlu0 %v1117
      %v1148 = vpop.xlane.xlu0 %1147
      %1149 = vadd.xlane.f32.xlu0 %v1118
      %v1150 = vpop.xlane.xlu0 %1149
      %v1167 = vlaneseq
      %v1168 = vand.u32 %v1167, 127
      %v1169 = vlaneseq
      %v1170 = vshrl.u32 %v1169, 7
      %v1171 = vsub.s32 %v1168, %v1170
      %v1172 = vrot.slane %v1120, %v1171
      %v1173 = vadd.s32 %v1168, 4294967288
      %v1174 = vlaneseq
      %v1175 = vshrl.u32 %v1174, 7
      %v1176 = vsub.s32 %v1173, %v1175
      %v1177 = vrot.slane %v1122, %v1176
      %vm1178 = vcmask 130112
      %v1179 = vsel %vm1178, %v1177, %v1172
      %v1180 = vlaneseq
      %v1181 = vshrl.u32 %v1180, 7
      %v1182 = vsub.s32 %v1168, %v1181
      %v1183 = vrot.slane %v1124, %v1182
      %v1184 = vlaneseq
      %v1185 = vshrl.u32 %v1184, 7
      %v1186 = vsub.s32 %v1173, %v1185
      %v1187 = vrot.slane %v1126, %v1186
      %v1188 = vsel %vm1178, %v1187, %v1183
      %v1189 = vlaneseq
      %v1190 = vshrl.u32 %v1189, 7
      %v1191 = vsub.s32 %v1168, %v1190
      %v1192 = vrot.slane %v1128, %v1191
      %v1193 = vlaneseq
      %v1194 = vshrl.u32 %v1193, 7
      %v1195 = vsub.s32 %v1173, %v1194
      %v1196 = vrot.slane %v1130, %v1195
      %v1197 = vsel %vm1178, %v1196, %v1192
      %v1198 = vlaneseq
      %v1199 = vshrl.u32 %v1198, 7
      %v1200 = vsub.s32 %v1168, %v1199
      %v1201 = vrot.slane %v1132, %v1200
      %v1202 = vlaneseq
      %v1203 = vshrl.u32 %v1202, 7
      %v1204 = vsub.s32 %v1173, %v1203
      %v1205 = vrot.slane %v1134, %v1204
      %v1206 = vsel %vm1178, %v1205, %v1201
      %v1207 = vlaneseq
      %v1208 = vshrl.u32 %v1207, 7
      %v1209 = vsub.s32 %v1168, %v1208
      %v1210 = vrot.slane %v1136, %v1209
      %v1211 = vlaneseq
      %v1212 = vshrl.u32 %v1211, 7
      %v1213 = vsub.s32 %v1173, %v1212
      %v1214 = vrot.slane %v1138, %v1213
      %v1215 = vsel %vm1178, %v1214, %v1210
      %v1216 = vlaneseq
      %v1217 = vshrl.u32 %v1216, 7
      %v1218 = vsub.s32 %v1168, %v1217
      %v1219 = vrot.slane %v1140, %v1218
      %v1220 = vlaneseq
      %v1221 = vshrl.u32 %v1220, 7
      %v1222 = vsub.s32 %v1173, %v1221
      %v1223 = vrot.slane %v1142, %v1222
      %v1224 = vsel %vm1178, %v1223, %v1219
      %v1225 = vlaneseq
      %v1226 = vshrl.u32 %v1225, 7
      %v1227 = vsub.s32 %v1168, %v1226
      %v1228 = vrot.slane %v1144, %v1227
      %v1229 = vlaneseq
      %v1230 = vshrl.u32 %v1229, 7
      %v1231 = vsub.s32 %v1173, %v1230
      %v1232 = vrot.slane %v1146, %v1231
      %v1233 = vsel %vm1178, %v1232, %v1228
      %v1234 = vlaneseq
      %v1235 = vshrl.u32 %v1234, 7
      %v1236 = vsub.s32 %v1168, %v1235
      %v1237 = vrot.slane %v1148, %v1236
      %v1238 = vlaneseq
      %v1239 = vshrl.u32 %v1238, 7
      %v1240 = vsub.s32 %v1173, %v1239
      %v1241 = vrot.slane %v1150, %v1240
      %v1242 = vsel %vm1178, %v1241, %v1237
      %v1243 = vsel %vm930, %v1188, %v1179
      %v1244 = vsel %vm933, %v1197, %v1243
      %v1245 = vsel %vm936, %v1206, %v1244
      %v1246 = vsel %vm939, %v1215, %v1245
      %v1247 = vsel %vm942, %v1224, %v1246
      %v1248 = vsel %vm945, %v1233, %v1247
      %v1249 = vsel %vm948, %v1242, %v1248
      %1251 = vst.msk [vmem:[#allocation18] sm:$0xff] %vm165, %v1249
      %1252 = vst [vmem:[#allocation23] sm:$0xff] %v1012
      %v1253 = vld [vmem:[%s10] sm:$0xff]
      %v1254 = vld [vmem:[%s10 + $0x8] sm:$0xff]
      %v1255 = vsel %vm165, %v1249, 0
      %1257 = vmatprep.subr.mxu0 0.0
      %1258 = vmatpush1.msra.mxu0 0.0
      %1259 = vmatprep.subr.mxu0 0.0
      %1260 = vmatpush1.msra.mxu0 0.0
      %1261 = vmatprep.subr.mxu0 0.0
      %1262 = vmatpush1.msra.mxu0 0.0
      %1263 = vmatprep.subr.mxu0 0.0
      %1264 = vmatpush1.msra.mxu0 0.0
      %1265 = vmatprep.subr.mxu0 0.0
      %1266 = vmatpush1.msra.mxu0 0.0
      %1267 = vmatprep.subr.mxu0 0.0
      %1268 = vmatpush1.msra.mxu0 0.0
      %1269 = vmatprep.subr.mxu0 0.0
      %1270 = vmatpush1.msra.mxu0 0.0
      %1271 = vmatprep.subr.mxu0 0.0
      %1272 = vmatpush1.msra.mxu0 0.0
      %1273 = vmatprep.subr.mxu0 0.0
      %1274 = vmatpush1.msra.mxu0 0.0
      %1275 = vmatprep.subr.mxu0 0.0
      %1276 = vmatpush1.msra.mxu0 0.0
      %1277 = vmatprep.subr.mxu0 0.0
      %1278 = vmatpush1.msra.mxu0 0.0
      %1279 = vmatprep.subr.mxu0 0.0
      %1280 = vmatpush1.msra.mxu0 0.0
      %1281 = vmatprep.subr.mxu0 0.0
      %1282 = vmatpush1.msra.mxu0 0.0
      %1283 = vmatprep.subr.mxu0 0.0
      %1284 = vmatpush1.msra.mxu0 0.0
      %1285 = vmatprep.subr.mxu0 0.0
      %1286 = vmatpush1.msra.mxu0 %v1254
      %1287 = vmatprep.subr.mxu0 0.0
      %1288 = vmatpush1.msra.mxu0 %v1253
      %1289 = vmatprep.subr.mxu0 0.0
      %1290 = vmatpush2.msra.mxu0 0.0
      %1291 = vmatprep.subr.mxu0 0.0
      %1292 = vmatpush2.msra.mxu0 0.0
      %1293 = vmatprep.subr.mxu0 0.0
      %1294 = vmatpush2.msra.mxu0 0.0
      %1295 = vmatprep.subr.mxu0 0.0
      %1296 = vmatpush2.msra.mxu0 0.0
      %1297 = vmatprep.subr.mxu0 0.0
      %1298 = vmatpush2.msra.mxu0 0.0
      %1299 = vmatprep.subr.mxu0 0.0
      %1300 = vmatpush2.msra.mxu0 0.0
      %1301 = vmatprep.subr.mxu0 0.0
      %1302 = vmatpush2.msra.mxu0 0.0
      %1303 = vmatprep.subr.mxu0 0.0
      %1304 = vmatpush2.msra.mxu0 0.0
      %1305 = vmatprep.subr.mxu0 0.0
      %1306 = vmatpush2.msra.mxu0 0.0
      %1307 = vmatprep.subr.mxu0 0.0
      %1308 = vmatpush2.msra.mxu0 0.0
      %1309 = vmatprep.subr.mxu0 0.0
      %1310 = vmatpush2.msra.mxu0 0.0
      %1311 = vmatprep.subr.mxu0 0.0
      %1312 = vmatpush2.msra.mxu0 0.0
      %1313 = vmatprep.subr.mxu0 0.0
      %1314 = vmatpush2.msra.mxu0 0.0
      %1315 = vmatprep.subr.mxu0 0.0
      %1316 = vmatpush2.msra.mxu0 0.0
      %1317 = vmatprep.subr.mxu0 0.0
      %1318 = vmatpush2.msra.mxu0 0.0
      %1319 = vmatprep.subr.mxu0 0.0
      %1320 = vmatpush2.msra.mxu0 0.0
      %1321 = vmatprep.mubr.f32.mxu0 0.0
      %1322 = vmatmul.mubr.f32.gmra.mxu0 %v1255
      %v1323 = vpop.f32.mrf.mxu0
      %v1324 = vadd.f32 0.0, %v1323
      %v1325 = vpop.f32.mrf.mxu0
      %1326 = vdwg.mxu0
      %v1327 = vadd.f32 %v517, %v1324
      %vm1328 = vcmask 351552
      %v1329 = vsel %vm1328, %v515, -inf
      %1330 = vmax.xlane.f32.xlu0 %v1329
      %v1331 = vpop.xlane.xlu0 %1330
      %v1332 = vsub.f32 %v515, %v1331
      %v1333 = vmul.f32 %v1332, 1.442695
      %v1334 = vpow.pop %v1333
      %1336 = vrot.lane.b32.xlu0 %v1334, 88
      %v1337 = vpop.permute.xlu0 %1336
      %v1339 = vsel %vm543, %v1337, 0.0
      %1340 = vadd.xlane.f32.xlu0 %v1339
      %v1341 = vpop.xlane.xlu0 %1340
      %v1342 = vrcp.pop %v1341
      %v1343 = vmul.f32 %v1334, %v1342
      %s1344 = scalar_lea.vmem [#allocation23], 8
      %v1345 = vld [vmem:[%s1344] sm:$0xff]
      %s1347 = sor.u32 256, 22
      %1348 = vbcast.lane.b32.xlu0 %v571, %s1347
      %v1349 = vpop.permute.xlu0 %1348
      %s1351 = sor.u32 256, 30
      %1352 = vbcast.lane.b32.xlu0 %v571, %s1351
      %v1353 = vpop.permute.xlu0 %1352
      %s1355 = sor.u32 256, 22
      %1356 = vbcast.lane.b32.xlu0 %v582, %s1355
      %v1357 = vpop.permute.xlu0 %1356
      %s1359 = sor.u32 256, 30
      %1360 = vbcast.lane.b32.xlu0 %v582, %s1359
      %v1361 = vpop.permute.xlu0 %1360
      %s1363 = sor.u32 256, 22
      %1364 = vbcast.lane.b32.xlu0 %v593, %s1363
      %v1365 = vpop.permute.xlu0 %1364
      %s1367 = sor.u32 256, 30
      %1368 = vbcast.lane.b32.xlu0 %v593, %s1367
      %v1369 = vpop.permute.xlu0 %1368
      %s1371 = sor.u32 256, 22
      %1372 = vbcast.lane.b32.xlu0 %v604, %s1371
      %v1373 = vpop.permute.xlu0 %1372
      %s1375 = sor.u32 256, 30
      %1376 = vbcast.lane.b32.xlu0 %v604, %s1375
      %v1377 = vpop.permute.xlu0 %1376
      %s1379 = sor.u32 256, 22
      %1380 = vbcast.lane.b32.xlu0 %v615, %s1379
      %v1381 = vpop.permute.xlu0 %1380
      %s1383 = sor.u32 256, 30
      %1384 = vbcast.lane.b32.xlu0 %v615, %s1383
      %v1385 = vpop.permute.xlu0 %1384
      %s1387 = sor.u32 256, 22
      %1388 = vbcast.lane.b32.xlu0 %v626, %s1387
      %v1389 = vpop.permute.xlu0 %1388
      %s1391 = sor.u32 256, 30
      %1392 = vbcast.lane.b32.xlu0 %v626, %s1391
      %v1393 = vpop.permute.xlu0 %1392
      %s1395 = sor.u32 256, 22
      %1396 = vbcast.lane.b32.xlu0 %v637, %s1395
      %v1397 = vpop.permute.xlu0 %1396
      %s1399 = sor.u32 256, 30
      %1400 = vbcast.lane.b32.xlu0 %v637, %s1399
      %v1401 = vpop.permute.xlu0 %1400
      %s1403 = sor.u32 256, 22
      %1404 = vbcast.lane.b32.xlu0 %v648, %s1403
      %v1405 = vpop.permute.xlu0 %1404
      %s1407 = sor.u32 256, 30
      %1408 = vbcast.lane.b32.xlu0 %v648, %s1407
      %v1409 = vpop.permute.xlu0 %1408
      %v1410 = vmul.f32 %v551, %v1349
      %v1411 = vmul.f32 %v552, %v1353
      %v1412 = vmul.f32 %v553, %v1357
      %v1413 = vmul.f32 %v554, %v1361
      %v1414 = vmul.f32 %v555, %v1365
      %v1415 = vmul.f32 %v556, %v1369
      %v1416 = vmul.f32 %v557, %v1373
      %v1417 = vmul.f32 %v558, %v1377
      %v1418 = vmul.f32 %v559, %v1381
      %v1419 = vmul.f32 %v560, %v1385
      %v1420 = vmul.f32 %v561, %v1389
      %v1421 = vmul.f32 %v562, %v1393
      %v1422 = vmul.f32 %v563, %v1397
      %v1423 = vmul.f32 %v564, %v1401
      %v1424 = vmul.f32 %v565, %v1405
      %v1425 = vmul.f32 %v566, %v1409
      %v1426 = vadd.f32 %v1410, %v1411
      %v1427 = vrot.slane %v1426, 4
      %v1428 = vadd.f32 %v1426, %v1427
      %v1429 = vrot.slane %v1428, 2
      %v1430 = vadd.f32 %v1428, %v1429
      %v1431 = vrot.slane %v1430, 1
      %v1432 = vadd.f32 %v1430, %v1431
      %v1433 = vadd.f32 %v1412, %v1413
      %v1434 = vrot.slane %v1433, 4
      %v1435 = vadd.f32 %v1433, %v1434
      %v1436 = vrot.slane %v1435, 2
      %v1437 = vadd.f32 %v1435, %v1436
      %v1438 = vrot.slane %v1437, 1
      %v1439 = vadd.f32 %v1437, %v1438
      %v1440 = vadd.f32 %v1414, %v1415
      %v1441 = vrot.slane %v1440, 4
      %v1442 = vadd.f32 %v1440, %v1441
      %v1443 = vrot.slane %v1442, 2
      %v1444 = vadd.f32 %v1442, %v1443
      %v1445 = vrot.slane %v1444, 1
      %v1446 = vadd.f32 %v1444, %v1445
      %v1447 = vadd.f32 %v1416, %v1417
      %v1448 = vrot.slane %v1447, 4
      %v1449 = vadd.f32 %v1447, %v1448
      %v1450 = vrot.slane %v1449, 2
      %v1451 = vadd.f32 %v1449, %v1450
      %v1452 = vrot.slane %v1451, 1
      %v1453 = vadd.f32 %v1451, %v1452
      %v1454 = vadd.f32 %v1418, %v1419
      %v1455 = vrot.slane %v1454, 4
      %v1456 = vadd.f32 %v1454, %v1455
      %v1457 = vrot.slane %v1456, 2
      %v1458 = vadd.f32 %v1456, %v1457
      %v1459 = vrot.slane %v1458, 1
      %v1460 = vadd.f32 %v1458, %v1459
      %v1461 = vadd.f32 %v1420, %v1421
      %v1462 = vrot.slane %v1461, 4
      %v1463 = vadd.f32 %v1461, %v1462
      %v1464 = vrot.slane %v1463, 2
      %v1465 = vadd.f32 %v1463, %v1464
      %v1466 = vrot.slane %v1465, 1
      %v1467 = vadd.f32 %v1465, %v1466
      %v1468 = vadd.f32 %v1422, %v1423
      %v1469 = vrot.slane %v1468, 4
      %v1470 = vadd.f32 %v1468, %v1469
      %v1471 = vrot.slane %v1470, 2
      %v1472 = vadd.f32 %v1470, %v1471
      %v1473 = vrot.slane %v1472, 1
      %v1474 = vadd.f32 %v1472, %v1473
      %v1475 = vadd.f32 %v1424, %v1425
      %v1476 = vrot.slane %v1475, 4
      %v1477 = vadd.f32 %v1475, %v1476
      %v1478 = vrot.slane %v1477, 2
      %v1479 = vadd.f32 %v1477, %v1478
      %v1480 = vrot.slane %v1479, 1
      %v1481 = vadd.f32 %v1479, %v1480
      %1483 = vrot.lane.b32.xlu0 %v856, 106
      %v1484 = vpop.permute.xlu0 %1483
      %v1486 = vsel %vm165, %v1484, 0.0
      %1487 = vadd.xlane.f32.xlu0 %v1486
      %v1488 = vpop.xlane.xlu0 %1487
      %v1489 = vrsqrt.pop %v1488
      %v1490 = vmul.f32 %v1488, %v1489
      %vm1491 = vcmp.eq.f32.partialorder %v1488, inf
      %v1492 = vsel %vm1491, %v1488, %v1490
      %vm1493 = vcmp.eq.f32.partialorder %v1488, 0.0
      %v1494 = vand.u32 %v1488, 2147483648
      %v1495 = vsel %vm1493, %v1494, %v1492
      %v1496 = vmax.f32 %v1495, 1e-08
      %v1498 = vrot.slane %v1496, 1
      %v1499 = vrot.slane %v1496, 2
      %v1500 = vrot.slane %v1496, 3
      %v1501 = vrot.slane %v1496, 4
      %v1502 = vrot.slane %v1496, 5
      %v1503 = vrot.slane %v1496, 6
      %v1504 = vrot.slane %v1496, 7
      %v1513 = vmul.f32 %v867, %v1496
      %v1514 = vmul.f32 %v868, %v1498
      %v1515 = vmul.f32 %v869, %v1499
      %v1516 = vmul.f32 %v870, %v1500
      %v1517 = vmul.f32 %v871, %v1501
      %v1518 = vmul.f32 %v872, %v1502
      %v1519 = vmul.f32 %v873, %v1503
      %v1520 = vmul.f32 %v874, %v1504
      %v1521 = vrcp.pop %v1513
      %v1522 = vmul.f32 %v1432, %v1521
      %v1523 = vrcp.pop %v1514
      %v1524 = vmul.f32 %v1439, %v1523
      %v1525 = vrcp.pop %v1515
      %v1526 = vmul.f32 %v1446, %v1525
      %v1527 = vrcp.pop %v1516
      %v1528 = vmul.f32 %v1453, %v1527
      %v1529 = vrcp.pop %v1517
      %v1530 = vmul.f32 %v1460, %v1529
      %v1531 = vrcp.pop %v1518
      %v1532 = vmul.f32 %v1467, %v1531
      %v1533 = vrcp.pop %v1519
      %v1534 = vmul.f32 %v1474, %v1533
      %v1535 = vrcp.pop %v1520
      %v1536 = vmul.f32 %v1481, %v1535
      %1537 = vset.pattern.permute.xlu0 38
      %1538 = vperm.xlu0 %1537, %v527
      %v1539 = vpop.permute.xlu0 %1538
      %v1549 = vrot.slane %v1524, 7
      %v1550 = vsel %vm930, %v1549, %v1522
      %v1551 = vrot.slane %v1526, 6
      %v1552 = vsel %vm933, %v1551, %v1550
      %v1553 = vrot.slane %v1528, 5
      %v1554 = vsel %vm936, %v1553, %v1552
      %v1555 = vrot.slane %v1530, 4
      %v1556 = vsel %vm939, %v1555, %v1554
      %v1557 = vrot.slane %v1532, 3
      %v1558 = vsel %vm942, %v1557, %v1556
      %v1559 = vrot.slane %v1534, 2
      %v1560 = vsel %vm945, %v1559, %v1558
      %v1561 = vrot.slane %v1536, 1
      %v1562 = vsel %vm948, %v1561, %v1560
      %v1564 = vmul.f32 %v1539, %v1562
      %1565 = vmax.xlane.f32.xlu0 %v1564
      %v1566 = vpop.xlane.xlu0 %1565
      %v1567 = vsub.f32 %v1564, %v1566
      %v1568 = vmul.f32 %v1567, 1.442695
      %v1569 = vpow.pop %v1568
      %1570 = vadd.xlane.f32.xlu0 %v1569
      %v1571 = vpop.xlane.xlu0 %1570
      %v1572 = vrcp.pop %v1571
      %v1573 = vmul.f32 %v1569, %v1572
      %1574 = vset.pattern.permute.xlu0 39
      %1575 = vperm.xlu0 %1574, %v531
      %v1576 = vpop.permute.xlu0 %1575
      %v1578 = vmul.f32 %v1576, %v1573
      %1579 = vset.pattern.permute.xlu0 39
      %1580 = vperm.xlu0 %1579, %v967
      %v1581 = vpop.permute.xlu0 %1580
      %v1583 = vmul.f32 %v1581, %v1345
      %v1584 = vadd.f32 %v1578, %v1583
      %1585 = vrot.lane.b32.xlu0 %v1584, 1
      %v1586 = vpop.permute.xlu0 %1585
      %1587 = vrot.lane.b32.xlu0 %v1584, 127
      %v1588 = vpop.permute.xlu0 %1587
      %1590 = vset.pattern.permute.xlu0 40
      %1591 = vperm.xlu0 %1590, %v1343
      %v1592 = vpop.permute.xlu0 %1591
      %v1594 = vmul.f32 %v1586, %v1592
      %1595 = vset.pattern.permute.xlu0 41
      %1596 = vperm.xlu0 %1595, %v1343
      %v1597 = vpop.permute.xlu0 %1596
      %v1599 = vmul.f32 %v1584, %v1597
      %v1600 = vadd.f32 %v1594, %v1599
      %1601 = vset.pattern.permute.xlu0 42
      %1602 = vperm.xlu0 %1601, %v1343
      %v1603 = vpop.permute.xlu0 %1602
      %v1605 = vmul.f32 %v1588, %v1603
      %v1606 = vadd.f32 %v1600, %v1605
      %v1607 = vadd.f32 %v1606, 1e-16
      %v1608 = vlog2.pop %v1607
      %v1609 = vmul.f32 %v1608, 0.6931472
      %1610 = vset.pattern.permute.xlu0 43
      %1611 = vperm.xlu0 %1610, %v549
      %v1612 = vpop.permute.xlu0 %1611
      %v1614 = vmul.f32 %v1612, %v1609
      %v1615 = vmul.f32 %v1614, 1.442695
      %v1616 = vpow.pop %v1615
      %1617 = vadd.xlane.f32.xlu0 %v1616
      %v1618 = vpop.xlane.xlu0 %1617
      %v1619 = vadd.f32 %v1618, 1e-16
      %v1620 = vrcp.pop %v1619
      %v1621 = vmul.f32 %v1616, %v1620
      %v1623 = vcombine.high %v1621, %v1621
      %v1625 = vunpack.c.l.s4 1966171168
      %v1626 = vunpack.c.0.s8 %v1625
      %v1627 = vlaneseq
      %v1628 = vshrl.u32 %v1627, 7
      %v1629 = vsub.s32 %v1626, %v1628
      %v1630 = vrot.slane %v1621, %v1629
      %v1632 = vunpack.c.l.s4 1966171168
      %v1633 = vunpack.c.0.s8 %v1632
      %v1634 = vlaneseq
      %v1635 = vshrl.u32 %v1634, 7
      %v1636 = vsub.s32 %v1633, %v1635
      %v1637 = vrot.slane %v1623, %v1636
      %v1638 = vcombine.high %v1630, %v1630
      %v1639 = vcombine.high %v1637, %v1637
      %v1641 = vunpack.c.l.s4 1966171168
      %v1642 = vunpack.c.0.s8 %v1641
      %v1643 = vlaneseq
      %v1644 = vshrl.u32 %v1643, 7
      %v1645 = vsub.s32 %v1642, %v1644
      %v1646 = vrot.slane %v1630, %v1645
      %v1648 = vunpack.c.l.s4 1966171168
      %v1649 = vunpack.c.0.s8 %v1648
      %v1650 = vlaneseq
      %v1651 = vshrl.u32 %v1650, 7
      %v1652 = vsub.s32 %v1649, %v1651
      %v1653 = vrot.slane %v1637, %v1652
      %v1655 = vunpack.c.l.s4 1966171168
      %v1656 = vunpack.c.0.s8 %v1655
      %v1657 = vlaneseq
      %v1658 = vshrl.u32 %v1657, 7
      %v1659 = vsub.s32 %v1656, %v1658
      %v1660 = vrot.slane %v1638, %v1659
      %v1662 = vunpack.c.l.s4 1966171168
      %v1663 = vunpack.c.0.s8 %v1662
      %v1664 = vlaneseq
      %v1665 = vshrl.u32 %v1664, 7
      %v1666 = vsub.s32 %v1663, %v1665
      %v1667 = vrot.slane %v1639, %v1666
      %v1668 = vcombine.high %v1646, %v1646
      %v1669 = vcombine.high %v1653, %v1653
      %v1670 = vcombine.high %v1660, %v1660
      %v1671 = vcombine.high %v1667, %v1667
      %v1672 = vlaneseq
      %v1673 = vshrl.u32 %v1672, 7
      %v1674 = vsub.s32 0, %v1673
      %v1675 = vrot.slane %v531, %v1674
      %s1677 = sor.u32 256, 44
      %1678 = vbcast.lane.b32.xlu0 %v1675, %s1677
      %v1679 = vpop.permute.xlu0 %1678
      %s1681 = sor.u32 256, 52
      %1682 = vbcast.lane.b32.xlu0 %v1675, %s1681
      %v1683 = vpop.permute.xlu0 %1682
      %v1684 = vlaneseq
      %v1685 = vshrl.u32 %v1684, 7
      %v1686 = vsub.s32 1, %v1685
      %v1687 = vrot.slane %v531, %v1686
      %s1689 = sor.u32 256, 44
      %1690 = vbcast.lane.b32.xlu0 %v1687, %s1689
      %v1691 = vpop.permute.xlu0 %1690
      %s1693 = sor.u32 256, 52
      %1694 = vbcast.lane.b32.xlu0 %v1687, %s1693
      %v1695 = vpop.permute.xlu0 %1694
      %v1696 = vlaneseq
      %v1697 = vshrl.u32 %v1696, 7
      %v1698 = vsub.s32 2, %v1697
      %v1699 = vrot.slane %v531, %v1698
      %s1701 = sor.u32 256, 44
      %1702 = vbcast.lane.b32.xlu0 %v1699, %s1701
      %v1703 = vpop.permute.xlu0 %1702
      %s1705 = sor.u32 256, 52
      %1706 = vbcast.lane.b32.xlu0 %v1699, %s1705
      %v1707 = vpop.permute.xlu0 %1706
      %v1708 = vlaneseq
      %v1709 = vshrl.u32 %v1708, 7
      %v1710 = vsub.s32 3, %v1709
      %v1711 = vrot.slane %v531, %v1710
      %s1713 = sor.u32 256, 44
      %1714 = vbcast.lane.b32.xlu0 %v1711, %s1713
      %v1715 = vpop.permute.xlu0 %1714
      %s1717 = sor.u32 256, 52
      %1718 = vbcast.lane.b32.xlu0 %v1711, %s1717
      %v1719 = vpop.permute.xlu0 %1718
      %v1720 = vlaneseq
      %v1721 = vshrl.u32 %v1720, 7
      %v1722 = vsub.s32 4, %v1721
      %v1723 = vrot.slane %v531, %v1722
      %s1725 = sor.u32 256, 44
      %1726 = vbcast.lane.b32.xlu0 %v1723, %s1725
      %v1727 = vpop.permute.xlu0 %1726
      %s1729 = sor.u32 256, 52
      %1730 = vbcast.lane.b32.xlu0 %v1723, %s1729
      %v1731 = vpop.permute.xlu0 %1730
      %v1732 = vlaneseq
      %v1733 = vshrl.u32 %v1732, 7
      %v1734 = vsub.s32 5, %v1733
      %v1735 = vrot.slane %v531, %v1734
      %s1737 = sor.u32 256, 44
      %1738 = vbcast.lane.b32.xlu0 %v1735, %s1737
      %v1739 = vpop.permute.xlu0 %1738
      %s1741 = sor.u32 256, 52
      %1742 = vbcast.lane.b32.xlu0 %v1735, %s1741
      %v1743 = vpop.permute.xlu0 %1742
      %v1744 = vlaneseq
      %v1745 = vshrl.u32 %v1744, 7
      %v1746 = vsub.s32 6, %v1745
      %v1747 = vrot.slane %v531, %v1746
      %s1749 = sor.u32 256, 44
      %1750 = vbcast.lane.b32.xlu0 %v1747, %s1749
      %v1751 = vpop.permute.xlu0 %1750
      %s1753 = sor.u32 256, 52
      %1754 = vbcast.lane.b32.xlu0 %v1747, %s1753
      %v1755 = vpop.permute.xlu0 %1754
      %v1756 = vlaneseq
      %v1757 = vshrl.u32 %v1756, 7
      %v1758 = vsub.s32 7, %v1757
      %v1759 = vrot.slane %v531, %v1758
      %s1761 = sor.u32 256, 44
      %1762 = vbcast.lane.b32.xlu0 %v1759, %s1761
      %v1763 = vpop.permute.xlu0 %1762
      %s1765 = sor.u32 256, 52
      %1766 = vbcast.lane.b32.xlu0 %v1759, %s1765
      %v1767 = vpop.permute.xlu0 %1766
      %v1768 = vlaneseq
      %v1769 = vshrl.u32 %v1768, 7
      %v1770 = vsub.s32 0, %v1769
      %v1771 = vrot.slane %v1646, %v1770
      %v1772 = vlaneseq
      %v1773 = vshrl.u32 %v1772, 7
      %v1774 = vsub.s32 0, %v1773
      %v1775 = vrot.slane %v1660, %v1774
      %v1776 = vlaneseq
      %v1777 = vshrl.u32 %v1776, 7
      %v1778 = vsub.s32 0, %v1777
      %v1779 = vrot.slane %v1668, %v1778
      %v1780 = vlaneseq
      %v1781 = vshrl.u32 %v1780, 7
      %v1782 = vsub.s32 0, %v1781
      %v1783 = vrot.slane %v1670, %v1782
      %v1784 = vlaneseq
      %v1785 = vshrl.u32 %v1784, 7
      %v1786 = vsub.s32 0, %v1785
      %v1787 = vrot.slane %v1653, %v1786
      %v1788 = vlaneseq
      %v1789 = vshrl.u32 %v1788, 7
      %v1790 = vsub.s32 0, %v1789
      %v1791 = vrot.slane %v1667, %v1790
      %v1792 = vlaneseq
      %v1793 = vshrl.u32 %v1792, 7
      %v1794 = vsub.s32 0, %v1793
      %v1795 = vrot.slane %v1669, %v1794
      %v1796 = vlaneseq
      %v1797 = vshrl.u32 %v1796, 7
      %v1798 = vsub.s32 0, %v1797
      %v1799 = vrot.slane %v1671, %v1798
      %v1808 = vmul.f32 %v1771, %v1679
      %v1809 = vmul.f32 %v1771, %v1683
      %v1810 = vmul.f32 %v1775, %v1691
      %v1811 = vmul.f32 %v1775, %v1695
      %v1812 = vmul.f32 %v1779, %v1703
      %v1813 = vmul.f32 %v1779, %v1707
      %v1814 = vmul.f32 %v1783, %v1715
      %v1815 = vmul.f32 %v1783, %v1719
      %v1816 = vmul.f32 %v1787, %v1727
      %v1817 = vmul.f32 %v1787, %v1731
      %v1818 = vmul.f32 %v1791, %v1739
      %v1819 = vmul.f32 %v1791, %v1743
      %v1820 = vmul.f32 %v1795, %v1751
      %v1821 = vmul.f32 %v1795, %v1755
      %v1822 = vmul.f32 %v1799, %v1763
      %v1823 = vmul.f32 %v1799, %v1767
      %v1824 = vlaneseq
      %v1825 = vshrl.u32 %v1824, 7
      %v1826 = vsub.s32 0, %v1825
      %v1827 = vrot.slane %v515, %v1826
      %s1829 = sor.u32 256, 60
      %1830 = vbcast.lane.b32.xlu0 %v1827, %s1829
      %v1831 = vpop.permute.xlu0 %1830
      %s1833 = sor.u32 256, 68
      %1834 = vbcast.lane.b32.xlu0 %v1827, %s1833
      %v1835 = vpop.permute.xlu0 %1834
      %v1836 = vlaneseq
      %v1837 = vshrl.u32 %v1836, 7
      %v1838 = vsub.s32 1, %v1837
      %v1839 = vrot.slane %v515, %v1838
      %s1841 = sor.u32 256, 60
      %1842 = vbcast.lane.b32.xlu0 %v1839, %s1841
      %v1843 = vpop.permute.xlu0 %1842
      %s1845 = sor.u32 256, 68
      %1846 = vbcast.lane.b32.xlu0 %v1839, %s1845
      %v1847 = vpop.permute.xlu0 %1846
      %v1848 = vlaneseq
      %v1849 = vshrl.u32 %v1848, 7
      %v1850 = vsub.s32 2, %v1849
      %v1851 = vrot.slane %v515, %v1850
      %s1853 = sor.u32 256, 60
      %1854 = vbcast.lane.b32.xlu0 %v1851, %s1853
      %v1855 = vpop.permute.xlu0 %1854
      %s1857 = sor.u32 256, 68
      %1858 = vbcast.lane.b32.xlu0 %v1851, %s1857
      %v1859 = vpop.permute.xlu0 %1858
      %v1860 = vlaneseq
      %v1861 = vshrl.u32 %v1860, 7
      %v1862 = vsub.s32 3, %v1861
      %v1863 = vrot.slane %v515, %v1862
      %s1865 = sor.u32 256, 60
      %1866 = vbcast.lane.b32.xlu0 %v1863, %s1865
      %v1867 = vpop.permute.xlu0 %1866
      %s1869 = sor.u32 256, 68
      %1870 = vbcast.lane.b32.xlu0 %v1863, %s1869
      %v1871 = vpop.permute.xlu0 %1870
      %v1872 = vlaneseq
      %v1873 = vshrl.u32 %v1872, 7
      %v1874 = vsub.s32 4, %v1873
      %v1875 = vrot.slane %v515, %v1874
      %s1877 = sor.u32 256, 60
      %1878 = vbcast.lane.b32.xlu0 %v1875, %s1877
      %v1879 = vpop.permute.xlu0 %1878
      %s1881 = sor.u32 256, 68
      %1882 = vbcast.lane.b32.xlu0 %v1875, %s1881
      %v1883 = vpop.permute.xlu0 %1882
      %v1884 = vlaneseq
      %v1885 = vshrl.u32 %v1884, 7
      %v1886 = vsub.s32 5, %v1885
      %v1887 = vrot.slane %v515, %v1886
      %s1889 = sor.u32 256, 60
      %1890 = vbcast.lane.b32.xlu0 %v1887, %s1889
      %v1891 = vpop.permute.xlu0 %1890
      %s1893 = sor.u32 256, 68
      %1894 = vbcast.lane.b32.xlu0 %v1887, %s1893
      %v1895 = vpop.permute.xlu0 %1894
      %v1896 = vlaneseq
      %v1897 = vshrl.u32 %v1896, 7
      %v1898 = vsub.s32 6, %v1897
      %v1899 = vrot.slane %v515, %v1898
      %s1901 = sor.u32 256, 60
      %1902 = vbcast.lane.b32.xlu0 %v1899, %s1901
      %v1903 = vpop.permute.xlu0 %1902
      %s1905 = sor.u32 256, 68
      %1906 = vbcast.lane.b32.xlu0 %v1899, %s1905
      %v1907 = vpop.permute.xlu0 %1906
      %v1908 = vlaneseq
      %v1909 = vshrl.u32 %v1908, 7
      %v1910 = vsub.s32 7, %v1909
      %v1911 = vrot.slane %v515, %v1910
      %s1913 = sor.u32 256, 60
      %1914 = vbcast.lane.b32.xlu0 %v1911, %s1913
      %v1915 = vpop.permute.xlu0 %1914
      %s1917 = sor.u32 256, 68
      %1918 = vbcast.lane.b32.xlu0 %v1911, %s1917
      %v1919 = vpop.permute.xlu0 %1918
      %v1920 = vmul.f32 %v1771, %v1831
      %v1921 = vmul.f32 %v1771, %v1835
      %v1922 = vmul.f32 %v1775, %v1843
      %v1923 = vmul.f32 %v1775, %v1847
      %v1924 = vmul.f32 %v1779, %v1855
      %v1925 = vmul.f32 %v1779, %v1859
      %v1926 = vmul.f32 %v1783, %v1867
      %v1927 = vmul.f32 %v1783, %v1871
      %v1928 = vmul.f32 %v1787, %v1879
      %v1929 = vmul.f32 %v1787, %v1883
      %v1930 = vmul.f32 %v1791, %v1891
      %v1931 = vmul.f32 %v1791, %v1895
      %v1932 = vmul.f32 %v1795, %v1903
      %v1933 = vmul.f32 %v1795, %v1907
      %v1934 = vmul.f32 %v1799, %v1915
      %v1935 = vmul.f32 %v1799, %v1919
      %v1936 = vsub.f32 1.0, %v1808
      %v1937 = vsub.f32 1.0, %v1809
      %v1938 = vsub.f32 1.0, %v1810
      %v1939 = vsub.f32 1.0, %v1811
      %v1940 = vsub.f32 1.0, %v1812
      %v1941 = vsub.f32 1.0, %v1813
      %v1942 = vsub.f32 1.0, %v1814
      %v1943 = vsub.f32 1.0, %v1815
      %v1944 = vsub.f32 1.0, %v1816
      %v1945 = vsub.f32 1.0, %v1817
      %v1946 = vsub.f32 1.0, %v1818
      %v1947 = vsub.f32 1.0, %v1819
      %v1948 = vsub.f32 1.0, %v1820
      %v1949 = vsub.f32 1.0, %v1821
      %v1950 = vsub.f32 1.0, %v1822
      %v1951 = vsub.f32 1.0, %v1823
      %v1952 = vmul.f32 %v217, %v1936
      %v1953 = vmul.f32 %v218, %v1937
      %v1954 = vmul.f32 %v219, %v1938
      %v1955 = vmul.f32 %v220, %v1939
      %v1956 = vmul.f32 %v221, %v1940
      %v1957 = vmul.f32 %v222, %v1941
      %v1958 = vmul.f32 %v223, %v1942
      %v1959 = vmul.f32 %v224, %v1943
      %v1960 = vmul.f32 %v225, %v1944
      %v1961 = vmul.f32 %v226, %v1945
      %v1962 = vmul.f32 %v227, %v1946
      %v1963 = vmul.f32 %v228, %v1947
      %v1964 = vmul.f32 %v229, %v1948
      %v1965 = vmul.f32 %v230, %v1949
      %v1966 = vmul.f32 %v231, %v1950
      %v1967 = vmul.f32 %v232, %v1951
      %v1968 = vadd.f32 %v1952, %v1920
      %v1969 = vadd.f32 %v1953, %v1921
      %v1970 = vadd.f32 %v1954, %v1922
      %v1971 = vadd.f32 %v1955, %v1923
      %v1972 = vadd.f32 %v1956, %v1924
      %v1973 = vadd.f32 %v1957, %v1925
      %v1974 = vadd.f32 %v1958, %v1926
      %v1975 = vadd.f32 %v1959, %v1927
      %v1976 = vadd.f32 %v1960, %v1928
      %v1977 = vadd.f32 %v1961, %v1929
      %v1978 = vadd.f32 %v1962, %v1930
      %v1979 = vadd.f32 %v1963, %v1931
      %v1980 = vadd.f32 %v1964, %v1932
      %v1981 = vadd.f32 %v1965, %v1933
      %v1982 = vadd.f32 %v1966, %v1934
      %v1983 = vadd.f32 %v1967, %v1935
      %1984 = vst [vmem:[%s1344] sm:$0xff] %v1621
      %1985 = vst [vmem:[#allocation24] sm:$0xff] %v1968
      %1986 = vst [vmem:[#allocation24 + $0x8] sm:$0xff] %v1969
      %1987 = vst [vmem:[#allocation24 + $0x10] sm:$0xff] %v1970
      %1988 = vst [vmem:[#allocation24 + $0x18] sm:$0xff] %v1971
      %1989 = vst [vmem:[#allocation24 + $0x20] sm:$0xff] %v1972
      %1990 = vst [vmem:[#allocation24 + $0x28] sm:$0xff] %v1973
      %1991 = vst [vmem:[#allocation24 + $0x30] sm:$0xff] %v1974
      %1992 = vst [vmem:[#allocation24 + $0x38] sm:$0xff] %v1975
      %1993 = vst [vmem:[#allocation24 + $0x40] sm:$0xff] %v1976
      %1994 = vst [vmem:[#allocation24 + $0x48] sm:$0xff] %v1977
      %1995 = vst [vmem:[#allocation24 + $0x50] sm:$0xff] %v1978
      %1996 = vst [vmem:[#allocation24 + $0x58] sm:$0xff] %v1979
      %1997 = vst [vmem:[#allocation24 + $0x60] sm:$0xff] %v1980
      %1998 = vst [vmem:[#allocation24 + $0x68] sm:$0xff] %v1981
      %1999 = vst [vmem:[#allocation24 + $0x70] sm:$0xff] %v1982
      %2000 = vst [vmem:[#allocation24 + $0x78] sm:$0xff] %v1983
      %v2001 = vmul.f32 %v1327, 0.5
      %v2002 = vtanh.pop %v2001
      %v2003 = vmul.f32 %v2002, 0.5
      %v2004 = vadd.f32 %v2003, 0.5
      %s2005 = scalar_lea.vmem [#allocation17], %s214
      %2006 = vst [vmem:[%s2005] sm:$0xff] %v2004
    $region86: #{tpu_custom_call.1} parent=1 // loop_footer
      %s213 = sadd.s32 1, %s209
    $region87: #{tpu_custom_call.1} parent=1 // loop_footer_branch
      %208 = sbr.rel target = $region83
    $region88: #{tpu_custom_call.1} parent=1 // loop_exit
      _
    // Predicated region
    $region89: #{tpu_custom_call.1} parent=1 // pred_check
      _
    $region90: #{tpu_custom_call.1} parent=1 // pred_check_branch
      %2008 = sbr.rel (0) target = $region92
    $region91: #{tpu_custom_call.1} parent=1 // pred_region
      %s2010 = ssub.s32 1024, 1024
      %2011 = vsyncadd [#allocation4], %s2010
      %s2012 = sshll.u32 [#allocation17], 4
      %s2013 = int_to_ptr.vmem [resolvable:$true] %s2012
      %2018 = dma.vmem_to_hbm [thread:$0]  %s2013, 1024, %s11, [#allocation4], 128, 128, 8
    $region92: #{tpu_custom_call.1} parent=1 // pred_fallthru
      _
    // Predicated region
    $region93: #{tpu_custom_call.1} parent=1 // pred_check
      _
    $region94: #{tpu_custom_call.1} parent=1 // pred_check_branch
      %2020 = sbr.rel (0) target = $region96
    $region95: #{tpu_custom_call.1} parent=1 // pred_region
      %s2022 = ssub.s32 128, 128
      %2023 = vsyncadd [#allocation19], %s2022
      %s2025 = sshll.u32 [#allocation18], 4
      %s2026 = int_to_ptr.vmem [resolvable:$true] %s2025
      %2028 = dma.vmem_to_hbm [thread:$0]  %s2026, 128, %s12, [#allocation19]
    $region96: #{tpu_custom_call.1} parent=1 // pred_fallthru
      _
    // Predicated region
    $region97: #{tpu_custom_call.1} parent=1 // pred_check
      _
    $region98: #{tpu_custom_call.1} parent=1 // pred_check_branch
      %2030 = sbr.rel (0) target = $region100
    $region99: #{tpu_custom_call.1} parent=1 // pred_region
      %s2032 = ssub.s32 128, 128
      %2033 = vsyncadd [#allocation19], %s2032
      %s2035 = sshll.u32 [#allocation20], 4
      %s2036 = int_to_ptr.vmem [resolvable:$true] %s2035
      %2038 = dma.vmem_to_hbm [thread:$0]  %s2036, 128, %s13, [#allocation19]
    $region100: #{tpu_custom_call.1} parent=1 // pred_fallthru
      _
    // Predicated region
    $region101: #{tpu_custom_call.1} parent=1 // pred_check
      _
    $region102: #{tpu_custom_call.1} parent=1 // pred_check_branch
      %2040 = sbr.rel (0) target = $region104
    $region103: #{tpu_custom_call.1} parent=1 // pred_region
      %s2042 = ssub.s32 128, 128
      %2043 = vsyncadd [#allocation22], %s2042
      %s2045 = sshll.u32 [#allocation21], 4
      %s2046 = int_to_ptr.vmem [resolvable:$true] %s2045
      %2048 = dma.vmem_to_hbm [thread:$0]  %s2046, 128, %s14, [#allocation22]
    $region104: #{tpu_custom_call.1} parent=1 // pred_fallthru
      _
    // Predicated region
    $region105: #{tpu_custom_call.1} parent=1 // pred_check
      _
    $region106: #{tpu_custom_call.1} parent=1 // pred_check_branch
      %2050 = sbr.rel (0) target = $region108
    $region107: #{tpu_custom_call.1} parent=1 // pred_region
      %s2052 = ssub.s32 256, 256
      %2053 = vsyncadd [#allocation22], %s2052
      %s2054 = sshll.u32 [#allocation23], 4
      %s2055 = int_to_ptr.vmem [resolvable:$true] %s2054
      %2060 = dma.vmem_to_hbm [thread:$0]  %s2055, 256, %s15, [#allocation22], 128, 128, 8
    $region108: #{tpu_custom_call.1} parent=1 // pred_fallthru
      _
    // Predicated region
    $region109: #{tpu_custom_call.1} parent=1 // pred_check
      _
    $region110: #{tpu_custom_call.1} parent=1 // pred_check_branch
      %2062 = sbr.rel (0) target = $region112
    $region111: #{tpu_custom_call.1} parent=1 // pred_region
      %s2064 = ssub.s32 2048, 2048
      %2065 = vsyncadd [#allocation25], %s2064
      %s2066 = sshll.u32 [#allocation24], 4
      %s2067 = int_to_ptr.vmem [resolvable:$true] %s2066
      %2072 = dma.vmem_to_hbm [thread:$0]  %s2067, 2048, %s16, [#allocation25], 128, 128, 8
    $region112: #{tpu_custom_call.1} parent=1 // pred_fallthru
      _
    // Predicated region
    $region113: #{tpu_custom_call.1} parent=1 // pred_check
      _
    $region114: #{tpu_custom_call.1} parent=1 // pred_check_branch
      %2074 = sbr.rel (0) target = $region116
    $region115: #{tpu_custom_call.1} parent=1 // pred_region
      %2075 = dma.done [#allocation4], 1024
    $region116: #{tpu_custom_call.1} parent=1 // pred_fallthru
      _
    // Predicated region
    $region117: #{tpu_custom_call.1} parent=1 // pred_check
      _
    $region118: #{tpu_custom_call.1} parent=1 // pred_check_branch
      %2077 = sbr.rel (0) target = $region120
    $region119: #{tpu_custom_call.1} parent=1 // pred_region
      %2078 = dma.done [#allocation19], 128
    $region120: #{tpu_custom_call.1} parent=1 // pred_fallthru
      _
    // Predicated region
    $region121: #{tpu_custom_call.1} parent=1 // pred_check
      _
    $region122: #{tpu_custom_call.1} parent=1 // pred_check_branch
      %2080 = sbr.rel (0) target = $region124
    $region123: #{tpu_custom_call.1} parent=1 // pred_region
      %2081 = dma.done [#allocation19], 128
    $region124: #{tpu_custom_call.1} parent=1 // pred_fallthru
      _
    // Predicated region
    $region125: #{tpu_custom_call.1} parent=1 // pred_check
      _
    $region126: #{tpu_custom_call.1} parent=1 // pred_check_branch
      %2083 = sbr.rel (0) target = $region128
    $region127: #{tpu_custom_call.1} parent=1 // pred_region
      %2084 = dma.done [#allocation22], 128
    $region128: #{tpu_custom_call.1} parent=1 // pred_fallthru
      _
    // Predicated region
    $region129: #{tpu_custom_call.1} parent=1 // pred_check
      _
    $region130: #{tpu_custom_call.1} parent=1 // pred_check_branch
      %2086 = sbr.rel (0) target = $region132
    $region131: #{tpu_custom_call.1} parent=1 // pred_region
      %2087 = dma.done [#allocation22], 256
    $region132: #{tpu_custom_call.1} parent=1 // pred_fallthru
      _
    // Predicated region
    $region133: #{tpu_custom_call.1} parent=1 // pred_check
      _
    $region134: #{tpu_custom_call.1} parent=1 // pred_check_branch
      %2089 = sbr.rel (0) target = $region136
    $region135: #{tpu_custom_call.1} parent=1 // pred_region
      %2090 = dma.done [#allocation25], 2048
    $region136: #{tpu_custom_call.1} parent=1 // pred_fallthru
      _
    %2091 = vsyncpa [#allocation3], 1
    %2092 = vsyncpa [#allocation6], 1
    %2093 = vsyncpa [#allocation9], 1
    %2094 = vsyncpa [#allocation12], 1
    %2095 = vsyncpa [#allocation15], 1
    %2096 = vsyncpa [#allocation4], 1
    %2097 = vsyncpa [#allocation19], 1
    %2098 = vsyncpa [#allocation22], 1
    %2099 = vsyncpa [#allocation25], 1

</llo_original>
